<compile_context>
chip_gen: v6e
topology: v6e:2x2x1
jax: 0.10.0
libtpu: 0.0.40
codegen_flags: <defaults>
</compile_context>

<pallas_src>
import functools
import math

import jax
import jax.numpy as jnp
from jax import lax
from jax.experimental import pallas as pl
from jax.experimental.pallas import tpu as pltpu


# ----------------------------- kernel helpers -----------------------------

def _layernorm(x, gamma, beta, eps=1e-5):
    mu = jnp.mean(x, axis=-1, keepdims=True)
    var = jnp.mean((x - mu) ** 2, axis=-1, keepdims=True)
    return (x - mu) * lax.rsqrt(var + eps) * gamma + beta


def _gelu_exact(x):
    return 0.5 * x * (1.0 + lax.erf(x * (1.0 / math.sqrt(2.0))))


# ------------------------------- the kernel -------------------------------

def encoder_block_kernel(x_ref,
                         wqv_ref, bqv_ref, wr_ref, br_ref,
                         g1_ref, be1_ref, g2_ref, be2_ref,
                         w1_ref, bf1_ref, w2_ref, bf2_ref,
                         o_ref,
                         qk_heads, v_heads, ctx_cat,
                         *, n_heads):
    # x_ref block: (1, S, D) -- full sequence of this batch element (also K/V source)
    _, S, D = x_ref.shape
    tq = o_ref.shape[1]
    hs = D // n_heads
    scale = D ** (-0.5)
    qi = pl.program_id(1)
    mm_dt = wqv_ref.dtype            # MXU operand dtype (bf16 in prod, f32 for checks)

    # Hoisted parameter loads (read once; JAX does not CSE broadcasts).
    g1, be1 = g1_ref[0], be1_ref[0]
    g2, be2 = g2_ref[0], be2_ref[0]
    br = br_ref[0]
    bf1, bf2 = bf1_ref[0], bf2_ref[0]

    # ---- build Q/K (shared: k = query(x)) and V once per batch element ----
    @pl.when(qi == 0)
    def _build_qkv():
        xn = _layernorm(x_ref[0], g1, be1)                                # (S, D) f32
        qv = jnp.dot(xn.astype(mm_dt), wqv_ref[...],
                     preferred_element_type=jnp.float32) + bqv_ref[0]     # (S, 2D) f32
        qv = qv.astype(qk_heads.dtype)
        # One-time-per-batch split into head-major scratch.
        # TODO(synk): could be a single relayout (einshape) instead of H sliced stores.
        for h in range(n_heads):
            qk_heads[h] = qv[:, h * hs:(h + 1) * hs]
            v_heads[h] = qv[:, D + h * hs:D + (h + 1) * hs]

    # Query tile of x sliced out of the resident full-sequence block (no 2nd x stream).
    q_start = pl.multiple_of(qi * tq, tq)
    x_q = x_ref[0, pl.ds(q_start, tq), :]                                 # (TQ, D) f32

    k_all = qk_heads[...]                                                 # (H, S, hs)
    v_all = v_heads[...]                                                  # (H, S, hs)
    if tq == S:                                # single q-tile: the scratch IS the tile
        q_tile = k_all
    else:
        q_tile = qk_heads[:, pl.ds(q_start, tq), :]                       # (H, TQ, hs)

    # ---- attention: one batched contraction over heads (MXU) ----
    s = jnp.einsum("hqd,hkd->hqk", q_tile, k_all,
                   preferred_element_type=jnp.float32) * scale            # (H, TQ, S) f32
    s = s - jnp.max(s, axis=-1, keepdims=True)
    p = jnp.exp(s)
    prob = p * pl.reciprocal(jnp.sum(p, axis=-1, keepdims=True), approx=True)
    ctx = jnp.einsum("hqk,hkd->hqd", prob.astype(v_all.dtype), v_all,
                     preferred_element_type=jnp.float32)                  # (H, TQ, hs) f32

    # Heads -> lanes via cheap static lane-slice stores, then ONE full-K out-proj matmul
    # (ctx_cat @ wr == concat(heads) @ res_fc.weight.T).
    for h in range(n_heads):
        ctx_cat[:, h * hs:(h + 1) * hs] = ctx[h].astype(ctx_cat.dtype)
    attn = jnp.dot(ctx_cat[...], wr_ref[...],
                   preferred_element_type=jnp.float32) + br               # (TQ, D) f32

    x1 = x_q + attn                                                       # residual 1

    # ---- layernorm_pre_fc + FC (Linear -> GELU -> Linear) ----
    xn2 = _layernorm(x1, g2, be2)
    h1 = _gelu_exact(jnp.dot(xn2.astype(mm_dt), w1_ref[...],
                             preferred_element_type=jnp.float32) + bf1)
    h2 = jnp.dot(h1.astype(mm_dt), w2_ref[...],
                 preferred_element_type=jnp.float32) + bf2
    o_ref[0] = x1 + h2                                                    # residual 2


# ------------------------------ the wrapper -------------------------------

def _choose_tq(S, max_tq=128):
    """Sequence tile: full S if small, else the largest multiple-of-8 divisor <= max_tq."""
    if S <= max_tq:
        return S
    for tq in range(max_tq, 7, -8):
        if S % tq == 0:
            return tq
    # TODO(synk): pad S host-side (with key masking) for large ragged S.
    return S


def encoder_block(x, params, n_heads, matmul_dtype=jnp.bfloat16, max_tq=128):
    B, S, D = x.shape
    hs = D // n_heads
    tq = _choose_tq(S, max_tq)
    num_q = S // tq
    mm_dt = jnp.dtype(matmul_dtype)

    # Host-side packing: fused Q|V projection weight; matmul weights cast to MXU dtype.
    wqv = jnp.concatenate([params["wq"], params["wv"]], axis=1).astype(mm_dt)  # (D, 2D)
    bqv = jnp.concatenate([params["bq"], params["bv"]], axis=1)                # (1, 2D) f32
    wr = params["wr"].astype(mm_dt)                                            # (D, D)
    w1 = params["w1"].astype(mm_dt)                                            # (D, 4D)
    w2 = params["w2"].astype(mm_dt)                                            # (4D, D)

    weight_args = (wqv, bqv, wr, params["br"],
                   params["g1"], params["be1"], params["g2"], params["be2"],
                   w1, params["bf1"], w2, params["bf2"])

    def _const_spec(w):
        # Constant index_map -> single-buffer (the 2nd pipeline buffer is dead VMEM).
        return pl.BlockSpec(w.shape, lambda b, q: (0,) * w.ndim,
                            pipeline_mode=pl.Buffered(buffer_count=1))

    weight_specs = [_const_spec(w) for w in weight_args]

    # Explicit VMEM budget (with headroom) instead of the default scoped limit.
    param_bytes = sum(int(w.size) * w.dtype.itemsize for w in weight_args)
    scratch_bytes = (2 * n_heads * S * hs + tq * D) * mm_dt.itemsize
    act_bytes = 2 * S * D * 4 + 2 * tq * D * 4            # x block + out block (double-buffered)
    score_bytes = 2 * n_heads * tq * S * 4                # live score/prob slabs allowance
    est = param_bytes + scratch_bytes + act_bytes + score_bytes
    vmem_limit = int(min(96 * 2 ** 20, max(32 * 2 ** 20, int(est * 1.4))))

    # Advisory cost estimate for XLA scheduling (bf16 weight bytes, single x read).
    flops = int(B * S * D * (22 * D + 4 * S))
    transcendentals = int(B * S * (n_heads * S + 4 * D + 4))
    bytes_accessed = int(2 * B * S * D * 4 + param_bytes)

    return pl.pallas_call(
        functools.partial(encoder_block_kernel, n_heads=n_heads),
        out_shape=jax.ShapeDtypeStruct((B, S, D), jnp.float32),
        grid_spec=pltpu.PrefetchScalarGridSpec(
            num_scalar_prefetch=0,
            grid=(B, num_q),
            in_specs=[pl.BlockSpec((1, S, D), lambda b, q: (b, 0, 0))]    # full x (Q/K/V source)
                     + weight_specs,
            out_specs=pl.BlockSpec((1, tq, D), lambda b, q: (b, q, 0)),
            scratch_shapes=[pltpu.VMEM((n_heads, S, hs), mm_dt),          # q/k heads
                            pltpu.VMEM((n_heads, S, hs), mm_dt),          # v heads
                            pltpu.VMEM((tq, D), mm_dt)]),                 # ctx relayout
        compiler_params=pltpu.CompilerParams(
            dimension_semantics=("parallel", "arbitrary"),
            vmem_limit_bytes=vmem_limit),
        cost_estimate=pl.CostEstimate(flops=flops,
                                      transcendentals=transcendentals,
                                      bytes_accessed=bytes_accessed),
    )(x, *weight_args)


# ---------------------- pure-JAX reference (for check) ---------------------

def encoder_block_ref(x, params, n_heads):
    D = x.shape[-1]
    hs = D // n_heads

    def ln(v, g, b):
        mu = jnp.mean(v, axis=-1, keepdims=True)
        var = jnp.mean((v - mu) ** 2, axis=-1, keepdims=True)
        return (v - mu) / jnp.sqrt(var + 1e-5) * g[0] + b[0]

    xn = ln(x, params["g1"], params["be1"])
    q_all = xn @ params["wq"] + params["bq"][0]
    v_all = xn @ params["wv"] + params["bv"][0]
    outs = []
    for h in range(n_heads):
        q = q_all[..., h * hs:(h + 1) * hs]
        v = v_all[..., h * hs:(h + 1) * hs]
        score = jnp.einsum("bqd,bkd->bqk", q, q) * D ** (-0.5)   # k = query(x)
        prob = jax.nn.softmax(score, axis=-1)
        outs.append(jnp.einsum("bqk,bkd->bqd", prob, v))
    attn = jnp.concatenate(outs, axis=-1) @ params["wr"] + params["br"][0]
    x1 = x + attn
    xn2 = ln(x1, params["g2"], params["be2"])
    h1 = jax.nn.gelu(xn2 @ params["w1"] + params["bf1"][0], approximate=False)
    h2 = h1 @ params["w2"] + params["bf2"][0]
    return x1 + h2


# ---------------------------------- main -----------------------------------

if __name__ == "__main__":
    B, S, d_k, n_heads = 2, 8, 32, 4
    hs = d_k // n_heads

    key = jax.random.PRNGKey(0)
    ks = jax.random.split(key, 16)
    rnd = lambda k, shape, s=0.1: (s * jax.random.normal(k, shape)).astype(jnp.float32)

    params = {
        # attention projections (query is reused for keys, matching the module)
        "wq": rnd(ks[0], (d_k, n_heads * hs)), "bq": rnd(ks[1], (1, n_heads * hs)),
        "wv": rnd(ks[2], (d_k, n_heads * hs)), "bv": rnd(ks[3], (1, n_heads * hs)),
        "wr": rnd(ks[4], (n_heads * hs, d_k)), "br": rnd(ks[5], (1, d_k)),
        # layernorms (PyTorch default init: gamma=1, beta=0)
        "g1": jnp.ones((1, d_k), jnp.float32), "be1": jnp.zeros((1, d_k), jnp.float32),
        "g2": jnp.ones((1, d_k), jnp.float32), "be2": jnp.zeros((1, d_k), jnp.float32),
        # feed-forward
        "w1": rnd(ks[6], (d_k, 4 * d_k)), "bf1": rnd(ks[7], (1, 4 * d_k)),
        "w2": rnd(ks[8], (4 * d_k, d_k)), "bf2": rnd(ks[9], (1, d_k)),
    }

    x = jax.random.normal(ks[10], (B, S, d_k), dtype=jnp.float32)
    ref = encoder_block_ref(x, params, n_heads)

    # f32 MXU-operand path: tight check (only the approx softmax reciprocal differs).
    out_f32 = jax.block_until_ready(
        encoder_block(x, params, n_heads, matmul_dtype=jnp.float32))
    assert out_f32.shape == (B, S, d_k)
    err32 = float(jnp.max(jnp.abs(out_f32 - ref)))
    assert jnp.allclose(out_f32, ref, rtol=2e-3, atol=2e-3), err32

    # bf16 MXU-operand path (production default on v6e/v7x): looser tolerance.
    out_bf16 = jax.block_until_ready(
        encoder_block(x, params, n_heads, matmul_dtype=jnp.bfloat16))
    assert out_bf16.shape == (B, S, d_k)
    errbf = float(jnp.max(jnp.abs(out_bf16 - ref)))
    assert jnp.allclose(out_bf16, ref, rtol=5e-2, atol=5e-2), errbf

    print("KERNEL_OK")
</pallas_src>

<mosaic_0001>
module attributes {stable_mosaic.version = 11 : i64} {
  func.func @encoder_block_kernel(%arg0: i32, %arg1: i32, %arg2: memref<1x8x32xf32, #tpu.memory_space<vmem>>, %arg3: memref<32x64xf32, #tpu.memory_space<vmem>>, %arg4: memref<1x64xf32, #tpu.memory_space<vmem>>, %arg5: memref<32x32xf32, #tpu.memory_space<vmem>>, %arg6: memref<1x32xf32, #tpu.memory_space<vmem>>, %arg7: memref<1x32xf32, #tpu.memory_space<vmem>>, %arg8: memref<1x32xf32, #tpu.memory_space<vmem>>, %arg9: memref<1x32xf32, #tpu.memory_space<vmem>>, %arg10: memref<1x32xf32, #tpu.memory_space<vmem>>, %arg11: memref<32x128xf32, #tpu.memory_space<vmem>>, %arg12: memref<1x128xf32, #tpu.memory_space<vmem>>, %arg13: memref<128x32xf32, #tpu.memory_space<vmem>>, %arg14: memref<1x32xf32, #tpu.memory_space<vmem>>, %arg15: memref<1x8x32xf32, #tpu.memory_space<vmem>>, %arg16: memref<4x8x8xf32, #tpu.memory_space<vmem>>, %arg17: memref<4x8x8xf32, #tpu.memory_space<vmem>>, %arg18: memref<8x32xf32, #tpu.memory_space<vmem>>) attributes {dimension_semantics = [#tpu.dimension_semantics<parallel>, #tpu.dimension_semantics<arbitrary>], iteration_bounds = array<i64: 2, 1>, scalar_prefetch = 0 : i64, scratch_operands = 3 : i64, tpu.core_type = #tpu.core_type<tc>, window_params = [{transform_indices = @transform_0, window_bounds = array<i64: 1, 8, 32>}, {pipeline_mode = #tpu.pipeline_mode<synchronous>, transform_indices = @transform_1, window_bounds = array<i64: 32, 64>}, {pipeline_mode = #tpu.pipeline_mode<synchronous>, transform_indices = @transform_2, window_bounds = array<i64: 1, 64>}, {pipeline_mode = #tpu.pipeline_mode<synchronous>, transform_indices = @transform_3, window_bounds = array<i64: 32, 32>}, {pipeline_mode = #tpu.pipeline_mode<synchronous>, transform_indices = @transform_4, window_bounds = array<i64: 1, 32>}, {pipeline_mode = #tpu.pipeline_mode<synchronous>, transform_indices = @transform_5, window_bounds = array<i64: 1, 32>}, {pipeline_mode = #tpu.pipeline_mode<synchronous>, transform_indices = @transform_6, window_bounds = array<i64: 1, 32>}, {pipeline_mode = #tpu.pipeline_mode<synchronous>, transform_indices = @transform_7, window_bounds = array<i64: 1, 32>}, {pipeline_mode = #tpu.pipeline_mode<synchronous>, transform_indices = @transform_8, window_bounds = array<i64: 1, 32>}, {pipeline_mode = #tpu.pipeline_mode<synchronous>, transform_indices = @transform_9, window_bounds = array<i64: 32, 128>}, {pipeline_mode = #tpu.pipeline_mode<synchronous>, transform_indices = @transform_10, window_bounds = array<i64: 1, 128>}, {pipeline_mode = #tpu.pipeline_mode<synchronous>, transform_indices = @transform_11, window_bounds = array<i64: 128, 32>}, {pipeline_mode = #tpu.pipeline_mode<synchronous>, transform_indices = @transform_12, window_bounds = array<i64: 1, 32>}, {transform_indices = @transform_13, window_bounds = array<i64: 1, 8, 32>}]} {
    %c0 = arith.constant 0 : index
    %c0_0 = arith.constant 0 : index
    %0 = vector.load %arg7[%c0, %c0_0] : memref<1x32xf32, #tpu.memory_space<vmem>>, vector<1x32xf32>
    %1 = vector.shape_cast %0 : vector<1x32xf32> to vector<32xf32>
    %c0_1 = arith.constant 0 : index
    %c0_2 = arith.constant 0 : index
    %2 = vector.load %arg8[%c0_1, %c0_2] : memref<1x32xf32, #tpu.memory_space<vmem>>, vector<1x32xf32>
    %3 = vector.shape_cast %2 : vector<1x32xf32> to vector<32xf32>
    %c0_3 = arith.constant 0 : index
    %c0_4 = arith.constant 0 : index
    %4 = vector.load %arg9[%c0_3, %c0_4] : memref<1x32xf32, #tpu.memory_space<vmem>>, vector<1x32xf32>
    %5 = vector.shape_cast %4 : vector<1x32xf32> to vector<32xf32>
    %c0_5 = arith.constant 0 : index
    %c0_6 = arith.constant 0 : index
    %6 = vector.load %arg10[%c0_5, %c0_6] : memref<1x32xf32, #tpu.memory_space<vmem>>, vector<1x32xf32>
    %7 = vector.shape_cast %6 : vector<1x32xf32> to vector<32xf32>
    %c0_7 = arith.constant 0 : index
    %c0_8 = arith.constant 0 : index
    %8 = vector.load %arg6[%c0_7, %c0_8] : memref<1x32xf32, #tpu.memory_space<vmem>>, vector<1x32xf32>
    %9 = vector.shape_cast %8 : vector<1x32xf32> to vector<32xf32>
    %c0_9 = arith.constant 0 : index
    %c0_10 = arith.constant 0 : index
    %10 = vector.load %arg12[%c0_9, %c0_10] : memref<1x128xf32, #tpu.memory_space<vmem>>, vector<1x128xf32>
    %11 = vector.shape_cast %10 : vector<1x128xf32> to vector<128xf32>
    %c0_11 = arith.constant 0 : index
    %c0_12 = arith.constant 0 : index
    %12 = vector.load %arg14[%c0_11, %c0_12] : memref<1x32xf32, #tpu.memory_space<vmem>>, vector<1x32xf32>
    %13 = vector.shape_cast %12 : vector<1x32xf32> to vector<32xf32>
    %c0_i32 = arith.constant 0 : i32
    %14 = arith.cmpi eq, %arg1, %c0_i32 : i32
    %15 = arith.extui %14 : i1 to i32
    %c0_i32_13 = arith.constant 0 : i32
    %16 = arith.cmpi ne, %15, %c0_i32_13 : i32
    scf.if %16 {
      %c0_53 = arith.constant 0 : index
      %c0_54 = arith.constant 0 : index
      %c0_55 = arith.constant 0 : index
      %103 = vector.load %arg2[%c0_53, %c0_54, %c0_55] : memref<1x8x32xf32, #tpu.memory_space<vmem>>, vector<1x8x32xf32>
      %104 = vector.shape_cast %103 : vector<1x8x32xf32> to vector<8x32xf32>
      %cst_56 = arith.constant dense<0.000000e+00> : vector<8xf32>
      %105 = vector.multi_reduction <add>, %104, %cst_56 [1] : vector<8x32xf32> to vector<8xf32>
      %106 = vector.shape_cast %105 : vector<8xf32> to vector<8x1xf32>
      %cst_57 = arith.constant 3.200000e+01 : f32
      %107 = vector.broadcast %cst_57 : f32 to vector<8x1xf32>
      %108 = arith.divf %106, %107 : vector<8x1xf32>
      %109 = vector.broadcast %108 : vector<8x1xf32> to vector<8x32xf32>
      %110 = arith.subf %104, %109 : vector<8x32xf32>
      %111 = arith.mulf %110, %110 : vector<8x32xf32>
      %cst_58 = arith.constant dense<0.000000e+00> : vector<8xf32>
      %112 = vector.multi_reduction <add>, %111, %cst_58 [1] : vector<8x32xf32> to vector<8xf32>
      %113 = vector.shape_cast %112 : vector<8xf32> to vector<8x1xf32>
      %cst_59 = arith.constant 3.200000e+01 : f32
      %114 = vector.broadcast %cst_59 : f32 to vector<8x1xf32>
      %115 = arith.divf %113, %114 : vector<8x1xf32>
      %116 = vector.broadcast %108 : vector<8x1xf32> to vector<8x32xf32>
      %117 = arith.subf %104, %116 : vector<8x32xf32>
      %cst_60 = arith.constant 9.99999974E-6 : f32
      %118 = vector.broadcast %cst_60 : f32 to vector<8x1xf32>
      %119 = arith.addf %115, %118 : vector<8x1xf32>
      %120 = math.rsqrt %119 : vector<8x1xf32>
      %121 = vector.broadcast %120 : vector<8x1xf32> to vector<8x32xf32>
      %122 = arith.mulf %117, %121 : vector<8x32xf32>
      %123 = vector.shape_cast %1 : vector<32xf32> to vector<1x32xf32>
      %124 = vector.broadcast %123 : vector<1x32xf32> to vector<8x32xf32>
      %125 = arith.mulf %122, %124 : vector<8x32xf32>
      %126 = vector.shape_cast %3 : vector<32xf32> to vector<1x32xf32>
      %127 = vector.broadcast %126 : vector<1x32xf32> to vector<8x32xf32>
      %128 = arith.addf %125, %127 : vector<8x32xf32>
      %c0_61 = arith.constant 0 : index
      %c0_62 = arith.constant 0 : index
      %129 = vector.load %arg3[%c0_61, %c0_62] : memref<32x64xf32, #tpu.memory_space<vmem>>, vector<32x64xf32>
      %cst_63 = arith.constant dense<0.000000e+00> : vector<8x64xf32>
      %130 = tpu.matmul %128, %129, %cst_63 {dimension_numbers = #tpu.dot_dimension_numbers<[1], [0], [0], [1], [0, 0, 1, 1], [], []>} : vector<8x32xf32>, vector<32x64xf32>, vector<8x64xf32> -> vector<8x64xf32>
      %c0_64 = arith.constant 0 : index
      %c0_65 = arith.constant 0 : index
      %131 = vector.load %arg4[%c0_64, %c0_65] : memref<1x64xf32, #tpu.memory_space<vmem>>, vector<1x64xf32>
      %132 = vector.shape_cast %131 : vector<1x64xf32> to vector<64xf32>
      %133 = vector.shape_cast %132 : vector<64xf32> to vector<1x64xf32>
      %134 = vector.broadcast %133 : vector<1x64xf32> to vector<8x64xf32>
      %135 = arith.addf %130, %134 : vector<8x64xf32>
      %136 = vector.extract_strided_slice %135 {offsets = [0, 0], sizes = [8, 8], strides = [1, 1]} : vector<8x64xf32> to vector<8x8xf32>
      %c0_66 = arith.constant 0 : index
      %c0_67 = arith.constant 0 : index
      %c0_68 = arith.constant 0 : index
      %137 = vector.load %arg16[%c0_66, %c0_67, %c0_68] : memref<4x8x8xf32, #tpu.memory_space<vmem>>, vector<1x8x8xf32>
      %138 = vector.shape_cast %137 : vector<1x8x8xf32> to vector<8x8xf32>
      %139 = vector.shape_cast %136 : vector<8x8xf32> to vector<1x8x8xf32>
      tpu.vector_store %arg16[%c0_66, %c0_67, %c0_68], %139 {strides = array<i32>} : memref<4x8x8xf32, #tpu.memory_space<vmem>>, vector<1x8x8xf32>,
      %140 = vector.extract_strided_slice %135 {offsets = [0, 32], sizes = [8, 8], strides = [1, 1]} : vector<8x64xf32> to vector<8x8xf32>
      %c0_69 = arith.constant 0 : index
      %c0_70 = arith.constant 0 : index
      %c0_71 = arith.constant 0 : index
      %141 = vector.load %arg17[%c0_69, %c0_70, %c0_71] : memref<4x8x8xf32, #tpu.memory_space<vmem>>, vector<1x8x8xf32>
      %142 = vector.shape_cast %141 : vector<1x8x8xf32> to vector<8x8xf32>
      %143 = vector.shape_cast %140 : vector<8x8xf32> to vector<1x8x8xf32>
      tpu.vector_store %arg17[%c0_69, %c0_70, %c0_71], %143 {strides = array<i32>} : memref<4x8x8xf32, #tpu.memory_space<vmem>>, vector<1x8x8xf32>,
      %144 = vector.extract_strided_slice %135 {offsets = [0, 8], sizes = [8, 8], strides = [1, 1]} : vector<8x64xf32> to vector<8x8xf32>
      %c1 = arith.constant 1 : index
      %c0_72 = arith.constant 0 : index
      %c0_73 = arith.constant 0 : index
      %145 = vector.load %arg16[%c1, %c0_72, %c0_73] : memref<4x8x8xf32, #tpu.memory_space<vmem>>, vector<1x8x8xf32>
      %146 = vector.shape_cast %145 : vector<1x8x8xf32> to vector<8x8xf32>
      %147 = vector.shape_cast %144 : vector<8x8xf32> to vector<1x8x8xf32>
      tpu.vector_store %arg16[%c1, %c0_72, %c0_73], %147 {strides = array<i32>} : memref<4x8x8xf32, #tpu.memory_space<vmem>>, vector<1x8x8xf32>,
      %148 = vector.extract_strided_slice %135 {offsets = [0, 40], sizes = [8, 8], strides = [1, 1]} : vector<8x64xf32> to vector<8x8xf32>
      %c1_74 = arith.constant 1 : index
      %c0_75 = arith.constant 0 : index
      %c0_76 = arith.constant 0 : index
      %149 = vector.load %arg17[%c1_74, %c0_75, %c0_76] : memref<4x8x8xf32, #tpu.memory_space<vmem>>, vector<1x8x8xf32>
      %150 = vector.shape_cast %149 : vector<1x8x8xf32> to vector<8x8xf32>
      %151 = vector.shape_cast %148 : vector<8x8xf32> to vector<1x8x8xf32>
      tpu.vector_store %arg17[%c1_74, %c0_75, %c0_76], %151 {strides = array<i32>} : memref<4x8x8xf32, #tpu.memory_space<vmem>>, vector<1x8x8xf32>,
      %152 = vector.extract_strided_slice %135 {offsets = [0, 16], sizes = [8, 8], strides = [1, 1]} : vector<8x64xf32> to vector<8x8xf32>
      %c2 = arith.constant 2 : index
      %c0_77 = arith.constant 0 : index
      %c0_78 = arith.constant 0 : index
      %153 = vector.load %arg16[%c2, %c0_77, %c0_78] : memref<4x8x8xf32, #tpu.memory_space<vmem>>, vector<1x8x8xf32>
      %154 = vector.shape_cast %153 : vector<1x8x8xf32> to vector<8x8xf32>
      %155 = vector.shape_cast %152 : vector<8x8xf32> to vector<1x8x8xf32>
      tpu.vector_store %arg16[%c2, %c0_77, %c0_78], %155 {strides = array<i32>} : memref<4x8x8xf32, #tpu.memory_space<vmem>>, vector<1x8x8xf32>,
      %156 = vector.extract_strided_slice %135 {offsets = [0, 48], sizes = [8, 8], strides = [1, 1]} : vector<8x64xf32> to vector<8x8xf32>
      %c2_79 = arith.constant 2 : index
      %c0_80 = arith.constant 0 : index
      %c0_81 = arith.constant 0 : index
      %157 = vector.load %arg17[%c2_79, %c0_80, %c0_81] : memref<4x8x8xf32, #tpu.memory_space<vmem>>, vector<1x8x8xf32>
      %158 = vector.shape_cast %157 : vector<1x8x8xf32> to vector<8x8xf32>
      %159 = vector.shape_cast %156 : vector<8x8xf32> to vector<1x8x8xf32>
      tpu.vector_store %arg17[%c2_79, %c0_80, %c0_81], %159 {strides = array<i32>} : memref<4x8x8xf32, #tpu.memory_space<vmem>>, vector<1x8x8xf32>,
      %160 = vector.extract_strided_slice %135 {offsets = [0, 24], sizes = [8, 8], strides = [1, 1]} : vector<8x64xf32> to vector<8x8xf32>
      %c3 = arith.constant 3 : index
      %c0_82 = arith.constant 0 : index
      %c0_83 = arith.constant 0 : index
      %161 = vector.load %arg16[%c3, %c0_82, %c0_83] : memref<4x8x8xf32, #tpu.memory_space<vmem>>, vector<1x8x8xf32>
      %162 = vector.shape_cast %161 : vector<1x8x8xf32> to vector<8x8xf32>
      %163 = vector.shape_cast %160 : vector<8x8xf32> to vector<1x8x8xf32>
      tpu.vector_store %arg16[%c3, %c0_82, %c0_83], %163 {strides = array<i32>} : memref<4x8x8xf32, #tpu.memory_space<vmem>>, vector<1x8x8xf32>,
      %164 = vector.extract_strided_slice %135 {offsets = [0, 56], sizes = [8, 8], strides = [1, 1]} : vector<8x64xf32> to vector<8x8xf32>
      %c3_84 = arith.constant 3 : index
      %c0_85 = arith.constant 0 : index
      %c0_86 = arith.constant 0 : index
      %165 = vector.load %arg17[%c3_84, %c0_85, %c0_86] : memref<4x8x8xf32, #tpu.memory_space<vmem>>, vector<1x8x8xf32>
      %166 = vector.shape_cast %165 : vector<1x8x8xf32> to vector<8x8xf32>
      %167 = vector.shape_cast %164 : vector<8x8xf32> to vector<1x8x8xf32>
      tpu.vector_store %arg17[%c3_84, %c0_85, %c0_86], %167 {strides = array<i32>} : memref<4x8x8xf32, #tpu.memory_space<vmem>>, vector<1x8x8xf32>,
    } else {
    }
    %c8_i32 = arith.constant 8 : i32
    %17 = arith.muli %arg1, %c8_i32 : i32
    %18 = tpu.assume_multiple %17, 8 : i32
    %c0_14 = arith.constant 0 : index
    %19 = arith.index_cast %18 : i32 to index
    %c0_15 = arith.constant 0 : index
    %20 = vector.load %arg2[%c0_14, %19, %c0_15] : memref<1x8x32xf32, #tpu.memory_space<vmem>>, vector<1x8x32xf32>
    %21 = vector.shape_cast %20 : vector<1x8x32xf32> to vector<8x32xf32>
    %c0_16 = arith.constant 0 : index
    %c0_17 = arith.constant 0 : index
    %c0_18 = arith.constant 0 : index
    %22 = vector.load %arg16[%c0_16, %c0_17, %c0_18] : memref<4x8x8xf32, #tpu.memory_space<vmem>>, vector<4x8x8xf32>
    %c0_19 = arith.constant 0 : index
    %c0_20 = arith.constant 0 : index
    %c0_21 = arith.constant 0 : index
    %23 = vector.load %arg17[%c0_19, %c0_20, %c0_21] : memref<4x8x8xf32, #tpu.memory_space<vmem>>, vector<4x8x8xf32>
    "tpu.trace_start"() <{level = 10 : i32, message = "hqd,hkd->hqk"}> : () -> ()
    %cst = arith.constant dense<0.000000e+00> : vector<4x8x8xf32>
    %24 = tpu.matmul %22, %22, %cst {dimension_numbers = #tpu.dot_dimension_numbers<[2], [2], [1], [1], [0, 0, 0, 1, 1, 1], [0], [0]>} : vector<4x8x8xf32>, vector<4x8x8xf32>, vector<4x8x8xf32> -> vector<4x8x8xf32>
    "tpu.trace_stop"() : () -> ()
    %cst_22 = arith.constant 0.176776692 : f32
    %25 = vector.broadcast %cst_22 : f32 to vector<4x8x8xf32>
    %26 = arith.mulf %24, %25 : vector<4x8x8xf32>
    %cst_23 = arith.constant dense<0xFF800000> : vector<4x8xf32>
    %27 = vector.multi_reduction <maximumf>, %26, %cst_23 [2] : vector<4x8x8xf32> to vector<4x8xf32>
    %28 = vector.shape_cast %27 : vector<4x8xf32> to vector<4x8x1xf32>
    %29 = vector.broadcast %28 : vector<4x8x1xf32> to vector<4x8x8xf32>
    %30 = arith.subf %26, %29 : vector<4x8x8xf32>
    %31 = math.exp %30 : vector<4x8x8xf32>
    %cst_24 = arith.constant dense<0.000000e+00> : vector<4x8xf32>
    %32 = vector.multi_reduction <add>, %31, %cst_24 [2] : vector<4x8x8xf32> to vector<4x8xf32>
    %33 = vector.shape_cast %32 : vector<4x8xf32> to vector<4x8x1xf32>
    %34 = tpu.reciprocal %33 {approx = true} : vector<4x8x1xf32> -> vector<4x8x1xf32>
    %35 = vector.broadcast %34 : vector<4x8x1xf32> to vector<4x8x8xf32>
    %36 = arith.mulf %31, %35 : vector<4x8x8xf32>
    "tpu.trace_start"() <{level = 10 : i32, message = "hqk,hkd->hqd"}> : () -> ()
    %cst_25 = arith.constant dense<0.000000e+00> : vector<4x8x8xf32>
    %37 = tpu.matmul %36, %23, %cst_25 {dimension_numbers = #tpu.dot_dimension_numbers<[2], [1], [1], [2], [0, 0, 0, 1, 1, 2], [0], [0]>} : vector<4x8x8xf32>, vector<4x8x8xf32>, vector<4x8x8xf32> -> vector<4x8x8xf32>
    "tpu.trace_stop"() : () -> ()
    %38 = vector.extract_strided_slice %37 {offsets = [0, 0, 0], sizes = [1, 8, 8], strides = [1, 1, 1]} : vector<4x8x8xf32> to vector<1x8x8xf32>
    %39 = vector.shape_cast %38 : vector<1x8x8xf32> to vector<8x8xf32>
    %c0_26 = arith.constant 0 : index
    %c0_27 = arith.constant 0 : index
    %40 = vector.load %arg18[%c0_26, %c0_27] : memref<8x32xf32, #tpu.memory_space<vmem>>, vector<8x8xf32>
    tpu.vector_store %arg18[%c0_26, %c0_27], %39 {strides = array<i32>} : memref<8x32xf32, #tpu.memory_space<vmem>>, vector<8x8xf32>,
    %41 = vector.extract_strided_slice %37 {offsets = [1, 0, 0], sizes = [1, 8, 8], strides = [1, 1, 1]} : vector<4x8x8xf32> to vector<1x8x8xf32>
    %42 = vector.shape_cast %41 : vector<1x8x8xf32> to vector<8x8xf32>
    %c0_28 = arith.constant 0 : index
    %c8 = arith.constant 8 : index
    %43 = vector.load %arg18[%c0_28, %c8] : memref<8x32xf32, #tpu.memory_space<vmem>>, vector<8x8xf32>
    tpu.vector_store %arg18[%c0_28, %c8], %42 {strides = array<i32>} : memref<8x32xf32, #tpu.memory_space<vmem>>, vector<8x8xf32>,
    %44 = vector.extract_strided_slice %37 {offsets = [2, 0, 0], sizes = [1, 8, 8], strides = [1, 1, 1]} : vector<4x8x8xf32> to vector<1x8x8xf32>
    %45 = vector.shape_cast %44 : vector<1x8x8xf32> to vector<8x8xf32>
    %c0_29 = arith.constant 0 : index
    %c16 = arith.constant 16 : index
    %46 = vector.load %arg18[%c0_29, %c16] : memref<8x32xf32, #tpu.memory_space<vmem>>, vector<8x8xf32>
    tpu.vector_store %arg18[%c0_29, %c16], %45 {strides = array<i32>} : memref<8x32xf32, #tpu.memory_space<vmem>>, vector<8x8xf32>,
    %47 = vector.extract_strided_slice %37 {offsets = [3, 0, 0], sizes = [1, 8, 8], strides = [1, 1, 1]} : vector<4x8x8xf32> to vector<1x8x8xf32>
    %48 = vector.shape_cast %47 : vector<1x8x8xf32> to vector<8x8xf32>
    %c0_30 = arith.constant 0 : index
    %c24 = arith.constant 24 : index
    %49 = vector.load %arg18[%c0_30, %c24] : memref<8x32xf32, #tpu.memory_space<vmem>>, vector<8x8xf32>
    tpu.vector_store %arg18[%c0_30, %c24], %48 {strides = array<i32>} : memref<8x32xf32, #tpu.memory_space<vmem>>, vector<8x8xf32>,
    %c0_31 = arith.constant 0 : index
    %c0_32 = arith.constant 0 : index
    %50 = vector.load %arg18[%c0_31, %c0_32] : memref<8x32xf32, #tpu.memory_space<vmem>>, vector<8x32xf32>
    %c0_33 = arith.constant 0 : index
    %c0_34 = arith.constant 0 : index
    %51 = vector.load %arg5[%c0_33, %c0_34] : memref<32x32xf32, #tpu.memory_space<vmem>>, vector<32x32xf32>
    %cst_35 = arith.constant dense<0.000000e+00> : vector<8x32xf32>
    %52 = tpu.matmul %50, %51, %cst_35 {dimension_numbers = #tpu.dot_dimension_numbers<[1], [0], [0], [1], [0, 0, 1, 1], [], []>} : vector<8x32xf32>, vector<32x32xf32>, vector<8x32xf32> -> vector<8x32xf32>
    %53 = vector.shape_cast %9 : vector<32xf32> to vector<1x32xf32>
    %54 = vector.broadcast %53 : vector<1x32xf32> to vector<8x32xf32>
    %55 = arith.addf %52, %54 : vector<8x32xf32>
    %56 = arith.addf %21, %55 : vector<8x32xf32>
    %cst_36 = arith.constant dense<0.000000e+00> : vector<8xf32>
    %57 = vector.multi_reduction <add>, %56, %cst_36 [1] : vector<8x32xf32> to vector<8xf32>
    %58 = vector.shape_cast %57 : vector<8xf32> to vector<8x1xf32>
    %cst_37 = arith.constant 3.200000e+01 : f32
    %59 = vector.broadcast %cst_37 : f32 to vector<8x1xf32>
    %60 = arith.divf %58, %59 : vector<8x1xf32>
    %61 = vector.broadcast %60 : vector<8x1xf32> to vector<8x32xf32>
    %62 = arith.subf %56, %61 : vector<8x32xf32>
    %63 = arith.mulf %62, %62 : vector<8x32xf32>
    %cst_38 = arith.constant dense<0.000000e+00> : vector<8xf32>
    %64 = vector.multi_reduction <add>, %63, %cst_38 [1] : vector<8x32xf32> to vector<8xf32>
    %65 = vector.shape_cast %64 : vector<8xf32> to vector<8x1xf32>
    %cst_39 = arith.constant 3.200000e+01 : f32
    %66 = vector.broadcast %cst_39 : f32 to vector<8x1xf32>
    %67 = arith.divf %65, %66 : vector<8x1xf32>
    %68 = vector.broadcast %60 : vector<8x1xf32> to vector<8x32xf32>
    %69 = arith.subf %56, %68 : vector<8x32xf32>
    %cst_40 = arith.constant 9.99999974E-6 : f32
    %70 = vector.broadcast %cst_40 : f32 to vector<8x1xf32>
    %71 = arith.addf %67, %70 : vector<8x1xf32>
    %72 = math.rsqrt %71 : vector<8x1xf32>
    %73 = vector.broadcast %72 : vector<8x1xf32> to vector<8x32xf32>
    %74 = arith.mulf %69, %73 : vector<8x32xf32>
    %75 = vector.shape_cast %5 : vector<32xf32> to vector<1x32xf32>
    %76 = vector.broadcast %75 : vector<1x32xf32> to vector<8x32xf32>
    %77 = arith.mulf %74, %76 : vector<8x32xf32>
    %78 = vector.shape_cast %7 : vector<32xf32> to vector<1x32xf32>
    %79 = vector.broadcast %78 : vector<1x32xf32> to vector<8x32xf32>
    %80 = arith.addf %77, %79 : vector<8x32xf32>
    %c0_41 = arith.constant 0 : index
    %c0_42 = arith.constant 0 : index
    %81 = vector.load %arg11[%c0_41, %c0_42] : memref<32x128xf32, #tpu.memory_space<vmem>>, vector<32x128xf32>
    %cst_43 = arith.constant dense<0.000000e+00> : vector<8x128xf32>
    %82 = tpu.matmul %80, %81, %cst_43 {dimension_numbers = #tpu.dot_dimension_numbers<[1], [0], [0], [1], [0, 0, 1, 1], [], []>} : vector<8x32xf32>, vector<32x128xf32>, vector<8x128xf32> -> vector<8x128xf32>
    %83 = vector.shape_cast %11 : vector<128xf32> to vector<1x128xf32>
    %84 = vector.broadcast %83 : vector<1x128xf32> to vector<8x128xf32>
    %85 = arith.addf %82, %84 : vector<8x128xf32>
    %cst_44 = arith.constant 5.000000e-01 : f32
    %86 = vector.broadcast %cst_44 : f32 to vector<8x128xf32>
    %87 = arith.mulf %86, %85 : vector<8x128xf32>
    %cst_45 = arith.constant 0.707106769 : f32
    %88 = vector.broadcast %cst_45 : f32 to vector<8x128xf32>
    %89 = arith.mulf %85, %88 : vector<8x128xf32>
    %90 = math.erf %89 : vector<8x128xf32>
    %cst_46 = arith.constant 1.000000e+00 : f32
    %91 = vector.broadcast %cst_46 : f32 to vector<8x128xf32>
    %92 = arith.addf %91, %90 : vector<8x128xf32>
    %93 = arith.mulf %87, %92 : vector<8x128xf32>
    %c0_47 = arith.constant 0 : index
    %c0_48 = arith.constant 0 : index
    %94 = vector.load %arg13[%c0_47, %c0_48] : memref<128x32xf32, #tpu.memory_space<vmem>>, vector<128x32xf32>
    %cst_49 = arith.constant dense<0.000000e+00> : vector<8x32xf32>
    %95 = tpu.matmul %93, %94, %cst_49 {dimension_numbers = #tpu.dot_dimension_numbers<[1], [0], [0], [1], [0, 0, 1, 1], [], []>} : vector<8x128xf32>, vector<128x32xf32>, vector<8x32xf32> -> vector<8x32xf32>
    %96 = vector.shape_cast %13 : vector<32xf32> to vector<1x32xf32>
    %97 = vector.broadcast %96 : vector<1x32xf32> to vector<8x32xf32>
    %98 = arith.addf %95, %97 : vector<8x32xf32>
    %99 = arith.addf %56, %98 : vector<8x32xf32>
    %c0_50 = arith.constant 0 : index
    %c0_51 = arith.constant 0 : index
    %c0_52 = arith.constant 0 : index
    %100 = vector.load %arg15[%c0_50, %c0_51, %c0_52] : memref<1x8x32xf32, #tpu.memory_space<vmem>>, vector<1x8x32xf32>
    %101 = vector.shape_cast %100 : vector<1x8x32xf32> to vector<8x32xf32>
    %102 = vector.shape_cast %99 : vector<8x32xf32> to vector<1x8x32xf32>
    tpu.vector_store %arg15[%c0_50, %c0_51, %c0_52], %102 {strides = array<i32>} : memref<1x8x32xf32, #tpu.memory_space<vmem>>, vector<1x8x32xf32>,
    return
  }
  func.func @transform_0(%arg0: i32, %arg1: i32) -> (i32, i32, i32) {
    %c0_i32 = arith.constant 0 : i32
    %c0_i32_0 = arith.constant 0 : i32
    %c0_i32_1 = arith.constant 0 : i32
    return %arg0, %c0_i32, %c0_i32_0 : i32, i32, i32
  }
  func.func @transform_1(%arg0: i32, %arg1: i32) -> (i32, i32) {
    %c0_i32 = arith.constant 0 : i32
    %c0_i32_0 = arith.constant 0 : i32
    %c0_i32_1 = arith.constant 0 : i32
    return %c0_i32, %c0_i32_0 : i32, i32
  }
  func.func @transform_2(%arg0: i32, %arg1: i32) -> (i32, i32) {
    %c0_i32 = arith.constant 0 : i32
    %c0_i32_0 = arith.constant 0 : i32
    %c0_i32_1 = arith.constant 0 : i32
    return %c0_i32, %c0_i32_0 : i32, i32
  }
  func.func @transform_3(%arg0: i32, %arg1: i32) -> (i32, i32) {
    %c0_i32 = arith.constant 0 : i32
    %c0_i32_0 = arith.constant 0 : i32
    %c0_i32_1 = arith.constant 0 : i32
    return %c0_i32, %c0_i32_0 : i32, i32
  }
  func.func @transform_4(%arg0: i32, %arg1: i32) -> (i32, i32) {
    %c0_i32 = arith.constant 0 : i32
    %c0_i32_0 = arith.constant 0 : i32
    %c0_i32_1 = arith.constant 0 : i32
    return %c0_i32, %c0_i32_0 : i32, i32
  }
  func.func @transform_5(%arg0: i32, %arg1: i32) -> (i32, i32) {
    %c0_i32 = arith.constant 0 : i32
    %c0_i32_0 = arith.constant 0 : i32
    %c0_i32_1 = arith.constant 0 : i32
    return %c0_i32, %c0_i32_0 : i32, i32
  }
  func.func @transform_6(%arg0: i32, %arg1: i32) -> (i32, i32) {
    %c0_i32 = arith.constant 0 : i32
    %c0_i32_0 = arith.constant 0 : i32
    %c0_i32_1 = arith.constant 0 : i32
    return %c0_i32, %c0_i32_0 : i32, i32
  }
  func.func @transform_7(%arg0: i32, %arg1: i32) -> (i32, i32) {
    %c0_i32 = arith.constant 0 : i32
    %c0_i32_0 = arith.constant 0 : i32
    %c0_i32_1 = arith.constant 0 : i32
    return %c0_i32, %c0_i32_0 : i32, i32
  }
  func.func @transform_8(%arg0: i32, %arg1: i32) -> (i32, i32) {
    %c0_i32 = arith.constant 0 : i32
    %c0_i32_0 = arith.constant 0 : i32
    %c0_i32_1 = arith.constant 0 : i32
    return %c0_i32, %c0_i32_0 : i32, i32
  }
  func.func @transform_9(%arg0: i32, %arg1: i32) -> (i32, i32) {
    %c0_i32 = arith.constant 0 : i32
    %c0_i32_0 = arith.constant 0 : i32
    %c0_i32_1 = arith.constant 0 : i32
    return %c0_i32, %c0_i32_0 : i32, i32
  }
  func.func @transform_10(%arg0: i32, %arg1: i32) -> (i32, i32) {
    %c0_i32 = arith.constant 0 : i32
    %c0_i32_0 = arith.constant 0 : i32
    %c0_i32_1 = arith.constant 0 : i32
    return %c0_i32, %c0_i32_0 : i32, i32
  }
  func.func @transform_11(%arg0: i32, %arg1: i32) -> (i32, i32) {
    %c0_i32 = arith.constant 0 : i32
    %c0_i32_0 = arith.constant 0 : i32
    %c0_i32_1 = arith.constant 0 : i32
    return %c0_i32, %c0_i32_0 : i32, i32
  }
  func.func @transform_12(%arg0: i32, %arg1: i32) -> (i32, i32) {
    %c0_i32 = arith.constant 0 : i32
    %c0_i32_0 = arith.constant 0 : i32
    %c0_i32_1 = arith.constant 0 : i32
    return %c0_i32, %c0_i32_0 : i32, i32
  }
  func.func @transform_13(%arg0: i32, %arg1: i32) -> (i32, i32, i32) {
    %c0_i32 = arith.constant 0 : i32
    %c0_i32_0 = arith.constant 0 : i32
    return %arg0, %arg1, %c0_i32 : i32, i32, i32
  }
}

</mosaic_0001>

<llo_original>
// kernel: tpu_custom_call.1
$region0: #{tpu_custom_call.1}
  #allocation0 [shape = 'u32[]', space=smem, size = 0x4, offset = 0x4, fixed_abs, tag = 'smem constant byte address 0x4 - core index']
  #allocation1 [shape = 'u32[144,128]{1,0:T(1,128)}', space=vmem, size = 0x12000, scoped, tag = 'internal scratch']
  #allocation2 [shape = 'f32[4,8,8]{2,1,0:T(8,128)}', space=vmem, size = 0x4000, scoped, tag = 'scratch operand']
  #allocation3 [shape = 'f32[4,8,8]{2,1,0:T(8,128)}', space=vmem, size = 0x4000, scoped, tag = 'scratch operand']
  #allocation4 [shape = 'f32[8,32]{1,0:T(8,128)}', space=vmem, size = 0x1000, scoped, tag = 'scratch operand']
  %s0 = inlined_call_operand.vmem [shape: f32[2,8,32], index: 0, kind: input, shape index: {}]
  %s1 = inlined_call_operand.vmem [shape: f32[32,64], index: 1, kind: input, shape index: {}]
  %s2 = inlined_call_operand.vmem [shape: f32[1,64], index: 2, kind: input, shape index: {}]
  %s3 = inlined_call_operand.vmem [shape: f32[32,32], index: 3, kind: input, shape index: {}]
  %s4 = inlined_call_operand.vmem [shape: f32[1,32], index: 4, kind: input, shape index: {}]
  %s5 = inlined_call_operand.vmem [shape: f32[1,32], index: 5, kind: input, shape index: {}]
  %s6 = inlined_call_operand.vmem [shape: f32[1,32], index: 6, kind: input, shape index: {}]
  %s7 = inlined_call_operand.vmem [shape: f32[1,32], index: 7, kind: input, shape index: {}]
  %s8 = inlined_call_operand.vmem [shape: f32[1,32], index: 8, kind: input, shape index: {}]
  %s9 = inlined_call_operand.vmem [shape: f32[32,128], index: 9, kind: input, shape index: {}]
  %s10 = inlined_call_operand.vmem [shape: f32[1,128], index: 10, kind: input, shape index: {}]
  %s11 = inlined_call_operand.vmem [shape: f32[128,32], index: 11, kind: input, shape index: {}]
  %s12 = inlined_call_operand.vmem [shape: f32[1,32], index: 12, kind: input, shape index: {}]
  %s13 = inlined_call_operand.hbm [shape: f32[2,8,32], index: 13, kind: output, shape index: {}]
  %s14 = sld [smem:[#allocation0]]
  $region89: #{tpu_custom_call.1} parent=0
    _
  %s16 = ssub.s32 1, %s14
  %s17 = scalar_select 0, %s16, %s14
  $region1: #{tpu_custom_call.1} parent=0
    #allocation5 [shape = 'u8[8192]{0}', space=vmem, size = 0x2000, scoped, tag = 'output window, operand 0']
    #allocation6 [shape = 's32[2]{0}', space=sflag, size = 0x8, scoped, tag = 'scoped memory for tpu_custom_call.1']
    %18 = vsyncpa [#allocation6], 0
    %s19 = scalar_lea.sflag [#allocation6], 1
    %20 = vsyncpa %s19, 0
    loop: start=0, step=1, limit=4
    $region2: #{tpu_custom_call.1} parent=1 // loop_pre_header
      _
    $region3: #{tpu_custom_call.1} parent=1 // loop_header
      %s22 = sphi 0, %s26
      %p23 = scmp.ge.s32.totalorder %s22, 4
      %s29 = sphi 0, %s41
      %s30 = sphi 0, %s37
      %s31 = sphi 0, %s29
      %s32 = sphi 0, %s30
      %s33 = sphi 0, %s31
      %s34 = sphi 0, %s32
      %s44 = sphi 0, %s46
      %s47 = sphi 0, %s44
      %s48 = sphi 0, %s47
      %s64 = sphi 0, %s48
      %s68 = sphi 0, %s68
      %s70 = sphi 0, %s68
      %s71 = sphi 0, %s70
      %s85 = sphi 0, %s71
      %s89 = sphi 0, %s89
      %s91 = sphi 0, %s89
      %s92 = sphi 0, %s91
      %s106 = sphi 0, %s92
      %s110 = sphi 0, %s110
      %s112 = sphi 0, %s110
      %s113 = sphi 0, %s112
      %s127 = sphi 0, %s113
      %s131 = sphi 0, %s131
      %s133 = sphi 0, %s131
      %s134 = sphi 0, %s133
      %s148 = sphi 0, %s134
      %s152 = sphi 0, %s152
      %s154 = sphi 0, %s152
      %s155 = sphi 0, %s154
      %s169 = sphi 0, %s155
      %s173 = sphi 0, %s173
      %s175 = sphi 0, %s173
      %s176 = sphi 0, %s175
      %s190 = sphi 0, %s176
      %s194 = sphi 0, %s194
      %s196 = sphi 0, %s194
      %s197 = sphi 0, %s196
      %s211 = sphi 0, %s197
      %s215 = sphi 0, %s215
      %s217 = sphi 0, %s215
      %s218 = sphi 0, %s217
      %s232 = sphi 0, %s218
      %s236 = sphi 0, %s236
      %s238 = sphi 0, %s236
      %s239 = sphi 0, %s238
      %s253 = sphi 0, %s239
      %s257 = sphi 0, %s257
      %s259 = sphi 0, %s257
      %s260 = sphi 0, %s259
      %s274 = sphi 0, %s260
      %s278 = sphi 0, %s278
      %s280 = sphi 0, %s278
      %s281 = sphi 0, %s280
      %s295 = sphi 0, %s281
      %s299 = sphi 0, %s299
      %s301 = sphi 0, %s299
      %s302 = sphi 0, %s301
      %s316 = sphi 0, %s302
      %s324 = sphi 0, %s326
      %s327 = sphi 0, %s324
      %s328 = sphi 0, %s327
      %s344 = sphi 0, %s328
    $region4: #{tpu_custom_call.1} parent=1 // loop_header_branch
      %25 = sbr.rel (%p23) target = $region8
    $region5: #{tpu_custom_call.1} parent=1 // loop_body
      %s27 = ssub.s32 %s22, 1
      %s28 = ssub.s32 %s22, 2
      %s35 = sadd.s32 1, %s30
      %p36 = scmp.ge.s32.totalorder %s35, 1
      %s37 = scalar_select %p36, 0, %s35
      %s38 = sadd.s32 1, %s29
      %s39 = scalar_select %p36, %s38, %s29
      %p40 = scmp.ge.s32.totalorder %s39, 2
      %s41 = scalar_select %p40, 0, %s39
      %s42 = ssub.s32 %s29, %s41
      %p43 = scmp.eq.s32.totalorder %s42, 0
      %s45 = sadd.s32 %s44, 1
      %s46 = scalar_select %p43, %s44, %s45
      %p49 = pneg %p43
      %p50 = scmp.eq.s32.totalorder %s22, 1
      %p51 = por %p49, %p50
      %p52 = scmp.ne.s32.totalorder %s44, %s47
      %p53 = scmp.eq.s32.totalorder %s22, 0
      %p54 = por %p52, %p53
      %p55 = scmp.ne.s32.totalorder %s44, %s47
      %p56 = scmp.eq.s32.totalorder %s27, 1
      %p57 = por %p55, %p56
      %p58 = scmp.ne.s32.totalorder %s47, %s48
      %p59 = scmp.eq.s32.totalorder %s27, 0
      %p60 = por %p58, %p59
      %p61 = scmp.ne.s32.totalorder %s47, %s48
      %p62 = scmp.eq.s32.totalorder %s28, 1
      %p63 = por %p61, %p62
      %p65 = scmp.ne.s32.totalorder %s48, %s64
      %p66 = scmp.eq.s32.totalorder %s28, 0
      %p67 = por %p65, %p66
      %s69 = sadd.s32 %s68, 1
      %p72 = scmp.eq.s32.totalorder %s22, 1
      %p73 = scmp.ne.s32.totalorder %s68, %s70
      %p74 = scmp.eq.s32.totalorder %s22, 0
      %p75 = por %p73, %p74
      %p76 = scmp.ne.s32.totalorder %s68, %s70
      %p77 = scmp.eq.s32.totalorder %s27, 1
      %p78 = por %p76, %p77
      %p79 = scmp.ne.s32.totalorder %s70, %s71
      %p80 = scmp.eq.s32.totalorder %s27, 0
      %p81 = por %p79, %p80
      %p82 = scmp.ne.s32.totalorder %s70, %s71
      %p83 = scmp.eq.s32.totalorder %s28, 1
      %p84 = por %p82, %p83
      %p86 = scmp.ne.s32.totalorder %s71, %s85
      %p87 = scmp.eq.s32.totalorder %s28, 0
      %p88 = por %p86, %p87
      %s90 = sadd.s32 %s89, 1
      %p93 = scmp.eq.s32.totalorder %s22, 1
      %p94 = scmp.ne.s32.totalorder %s89, %s91
      %p95 = scmp.eq.s32.totalorder %s22, 0
      %p96 = por %p94, %p95
      %p97 = scmp.ne.s32.totalorder %s89, %s91
      %p98 = scmp.eq.s32.totalorder %s27, 1
      %p99 = por %p97, %p98
      %p100 = scmp.ne.s32.totalorder %s91, %s92
      %p101 = scmp.eq.s32.totalorder %s27, 0
      %p102 = por %p100, %p101
      %p103 = scmp.ne.s32.totalorder %s91, %s92
      %p104 = scmp.eq.s32.totalorder %s28, 1
      %p105 = por %p103, %p104
      %p107 = scmp.ne.s32.totalorder %s92, %s106
      %p108 = scmp.eq.s32.totalorder %s28, 0
      %p109 = por %p107, %p108
      %s111 = sadd.s32 %s110, 1
      %p114 = scmp.eq.s32.totalorder %s22, 1
      %p115 = scmp.ne.s32.totalorder %s110, %s112
      %p116 = scmp.eq.s32.totalorder %s22, 0
      %p117 = por %p115, %p116
      %p118 = scmp.ne.s32.totalorder %s110, %s112
      %p119 = scmp.eq.s32.totalorder %s27, 1
      %p120 = por %p118, %p119
      %p121 = scmp.ne.s32.totalorder %s112, %s113
      %p122 = scmp.eq.s32.totalorder %s27, 0
      %p123 = por %p121, %p122
      %p124 = scmp.ne.s32.totalorder %s112, %s113
      %p125 = scmp.eq.s32.totalorder %s28, 1
      %p126 = por %p124, %p125
      %p128 = scmp.ne.s32.totalorder %s113, %s127
      %p129 = scmp.eq.s32.totalorder %s28, 0
      %p130 = por %p128, %p129
      %s132 = sadd.s32 %s131, 1
      %p135 = scmp.eq.s32.totalorder %s22, 1
      %p136 = scmp.ne.s32.totalorder %s131, %s133
      %p137 = scmp.eq.s32.totalorder %s22, 0
      %p138 = por %p136, %p137
      %p139 = scmp.ne.s32.totalorder %s131, %s133
      %p140 = scmp.eq.s32.totalorder %s27, 1
      %p141 = por %p139, %p140
      %p142 = scmp.ne.s32.totalorder %s133, %s134
      %p143 = scmp.eq.s32.totalorder %s27, 0
      %p144 = por %p142, %p143
      %p145 = scmp.ne.s32.totalorder %s133, %s134
      %p146 = scmp.eq.s32.totalorder %s28, 1
      %p147 = por %p145, %p146
      %p149 = scmp.ne.s32.totalorder %s134, %s148
      %p150 = scmp.eq.s32.totalorder %s28, 0
      %p151 = por %p149, %p150
      %s153 = sadd.s32 %s152, 1
      %p156 = scmp.eq.s32.totalorder %s22, 1
      %p157 = scmp.ne.s32.totalorder %s152, %s154
      %p158 = scmp.eq.s32.totalorder %s22, 0
      %p159 = por %p157, %p158
      %p160 = scmp.ne.s32.totalorder %s152, %s154
      %p161 = scmp.eq.s32.totalorder %s27, 1
      %p162 = por %p160, %p161
      %p163 = scmp.ne.s32.totalorder %s154, %s155
      %p164 = scmp.eq.s32.totalorder %s27, 0
      %p165 = por %p163, %p164
      %p166 = scmp.ne.s32.totalorder %s154, %s155
      %p167 = scmp.eq.s32.totalorder %s28, 1
      %p168 = por %p166, %p167
      %p170 = scmp.ne.s32.totalorder %s155, %s169
      %p171 = scmp.eq.s32.totalorder %s28, 0
      %p172 = por %p170, %p171
      %s174 = sadd.s32 %s173, 1
      %p177 = scmp.eq.s32.totalorder %s22, 1
      %p178 = scmp.ne.s32.totalorder %s173, %s175
      %p179 = scmp.eq.s32.totalorder %s22, 0
      %p180 = por %p178, %p179
      %p181 = scmp.ne.s32.totalorder %s173, %s175
      %p182 = scmp.eq.s32.totalorder %s27, 1
      %p183 = por %p181, %p182
      %p184 = scmp.ne.s32.totalorder %s175, %s176
      %p185 = scmp.eq.s32.totalorder %s27, 0
      %p186 = por %p184, %p185
      %p187 = scmp.ne.s32.totalorder %s175, %s176
      %p188 = scmp.eq.s32.totalorder %s28, 1
      %p189 = por %p187, %p188
      %p191 = scmp.ne.s32.totalorder %s176, %s190
      %p192 = scmp.eq.s32.totalorder %s28, 0
      %p193 = por %p191, %p192
      %s195 = sadd.s32 %s194, 1
      %p198 = scmp.eq.s32.totalorder %s22, 1
      %p199 = scmp.ne.s32.totalorder %s194, %s196
      %p200 = scmp.eq.s32.totalorder %s22, 0
      %p201 = por %p199, %p200
      %p202 = scmp.ne.s32.totalorder %s194, %s196
      %p203 = scmp.eq.s32.totalorder %s27, 1
      %p204 = por %p202, %p203
      %p205 = scmp.ne.s32.totalorder %s196, %s197
      %p206 = scmp.eq.s32.totalorder %s27, 0
      %p207 = por %p205, %p206
      %p208 = scmp.ne.s32.totalorder %s196, %s197
      %p209 = scmp.eq.s32.totalorder %s28, 1
      %p210 = por %p208, %p209
      %p212 = scmp.ne.s32.totalorder %s197, %s211
      %p213 = scmp.eq.s32.totalorder %s28, 0
      %p214 = por %p212, %p213
      %s216 = sadd.s32 %s215, 1
      %p219 = scmp.eq.s32.totalorder %s22, 1
      %p220 = scmp.ne.s32.totalorder %s215, %s217
      %p221 = scmp.eq.s32.totalorder %s22, 0
      %p222 = por %p220, %p221
      %p223 = scmp.ne.s32.totalorder %s215, %s217
      %p224 = scmp.eq.s32.totalorder %s27, 1
      %p225 = por %p223, %p224
      %p226 = scmp.ne.s32.totalorder %s217, %s218
      %p227 = scmp.eq.s32.totalorder %s27, 0
      %p228 = por %p226, %p227
      %p229 = scmp.ne.s32.totalorder %s217, %s218
      %p230 = scmp.eq.s32.totalorder %s28, 1
      %p231 = por %p229, %p230
      %p233 = scmp.ne.s32.totalorder %s218, %s232
      %p234 = scmp.eq.s32.totalorder %s28, 0
      %p235 = por %p233, %p234
      %s237 = sadd.s32 %s236, 1
      %p240 = scmp.eq.s32.totalorder %s22, 1
      %p241 = scmp.ne.s32.totalorder %s236, %s238
      %p242 = scmp.eq.s32.totalorder %s22, 0
      %p243 = por %p241, %p242
      %p244 = scmp.ne.s32.totalorder %s236, %s238
      %p245 = scmp.eq.s32.totalorder %s27, 1
      %p246 = por %p244, %p245
      %p247 = scmp.ne.s32.totalorder %s238, %s239
      %p248 = scmp.eq.s32.totalorder %s27, 0
      %p249 = por %p247, %p248
      %p250 = scmp.ne.s32.totalorder %s238, %s239
      %p251 = scmp.eq.s32.totalorder %s28, 1
      %p252 = por %p250, %p251
      %p254 = scmp.ne.s32.totalorder %s239, %s253
      %p255 = scmp.eq.s32.totalorder %s28, 0
      %p256 = por %p254, %p255
      %s258 = sadd.s32 %s257, 1
      %p261 = scmp.eq.s32.totalorder %s22, 1
      %p262 = scmp.ne.s32.totalorder %s257, %s259
      %p263 = scmp.eq.s32.totalorder %s22, 0
      %p264 = por %p262, %p263
      %p265 = scmp.ne.s32.totalorder %s257, %s259
      %p266 = scmp.eq.s32.totalorder %s27, 1
      %p267 = por %p265, %p266
      %p268 = scmp.ne.s32.totalorder %s259, %s260
      %p269 = scmp.eq.s32.totalorder %s27, 0
      %p270 = por %p268, %p269
      %p271 = scmp.ne.s32.totalorder %s259, %s260
      %p272 = scmp.eq.s32.totalorder %s28, 1
      %p273 = por %p271, %p272
      %p275 = scmp.ne.s32.totalorder %s260, %s274
      %p276 = scmp.eq.s32.totalorder %s28, 0
      %p277 = por %p275, %p276
      %s279 = sadd.s32 %s278, 1
      %p282 = scmp.eq.s32.totalorder %s22, 1
      %p283 = scmp.ne.s32.totalorder %s278, %s280
      %p284 = scmp.eq.s32.totalorder %s22, 0
      %p285 = por %p283, %p284
      %p286 = scmp.ne.s32.totalorder %s278, %s280
      %p287 = scmp.eq.s32.totalorder %s27, 1
      %p288 = por %p286, %p287
      %p289 = scmp.ne.s32.totalorder %s280, %s281
      %p290 = scmp.eq.s32.totalorder %s27, 0
      %p291 = por %p289, %p290
      %p292 = scmp.ne.s32.totalorder %s280, %s281
      %p293 = scmp.eq.s32.totalorder %s28, 1
      %p294 = por %p292, %p293
      %p296 = scmp.ne.s32.totalorder %s281, %s295
      %p297 = scmp.eq.s32.totalorder %s28, 0
      %p298 = por %p296, %p297
      %s300 = sadd.s32 %s299, 1
      %p303 = scmp.eq.s32.totalorder %s22, 1
      %p304 = scmp.ne.s32.totalorder %s299, %s301
      %p305 = scmp.eq.s32.totalorder %s22, 0
      %p306 = por %p304, %p305
      %p307 = scmp.ne.s32.totalorder %s299, %s301
      %p308 = scmp.eq.s32.totalorder %s27, 1
      %p309 = por %p307, %p308
      %p310 = scmp.ne.s32.totalorder %s301, %s302
      %p311 = scmp.eq.s32.totalorder %s27, 0
      %p312 = por %p310, %p311
      %p313 = scmp.ne.s32.totalorder %s301, %s302
      %p314 = scmp.eq.s32.totalorder %s28, 1
      %p315 = por %p313, %p314
      %p317 = scmp.ne.s32.totalorder %s302, %s316
      %p318 = scmp.eq.s32.totalorder %s28, 0
      %p319 = por %p317, %p318
      %s320 = ssub.s32 %s29, %s41
      %s321 = ssub.s32 %s30, %s37
      %s322 = sor.u32 %s320, %s321
      %p323 = scmp.eq.s32.totalorder %s322, 0
      %s325 = sadd.s32 %s324, 1
      %s326 = scalar_select %p323, %s324, %s325
      %p329 = pneg %p323
      %p330 = scmp.eq.s32.totalorder %s22, 1
      %p331 = por %p329, %p330
      %p332 = scmp.ne.s32.totalorder %s324, %s327
      %p333 = scmp.eq.s32.totalorder %s22, 0
      %p334 = por %p332, %p333
      %p335 = scmp.ne.s32.totalorder %s324, %s327
      %p336 = scmp.eq.s32.totalorder %s27, 1
      %p337 = por %p335, %p336
      %p338 = scmp.ne.s32.totalorder %s327, %s328
      %p339 = scmp.eq.s32.totalorder %s27, 0
      %p340 = por %p338, %p339
      %p341 = scmp.ne.s32.totalorder %s327, %s328
      %p342 = scmp.eq.s32.totalorder %s28, 1
      %p343 = por %p341, %p342
      %p345 = scmp.ne.s32.totalorder %s328, %s344
      %p346 = scmp.eq.s32.totalorder %s28, 0
      %p347 = por %p345, %p346
      %p348 = scmp.le.s32.totalorder 1, %s22
      %p349 = scmp.lt.s32.totalorder %s22, 3
      %p350 = pnand %p348, %p349
      %p351 = pneg %p350
      // Predicated region
      $region9: #{tpu_custom_call.1} parent=5 // pred_check
        _
      $region10: #{tpu_custom_call.1} parent=5 // pred_check_branch
        %353 = sbr.rel (%p350) target = $region12
      $region11: #{tpu_custom_call.1} parent=5 // pred_region
        %s354 = ssub.s32 %s22, 1
        // Predicated region
        $region13: #{tpu_custom_call.1} parent=11 // pred_check
          %p355 = pneg %p81
        $region14: #{tpu_custom_call.1} parent=11 // pred_check_branch
          %357 = sbr.rel (%p355) target = $region16
        $region15: #{tpu_custom_call.1} parent=11 // pred_region
          _
        $region16: #{tpu_custom_call.1} parent=11 // pred_fallthru
          _
        // Predicated region
        $region17: #{tpu_custom_call.1} parent=11 // pred_check
          %p358 = pneg %p102
        $region18: #{tpu_custom_call.1} parent=11 // pred_check_branch
          %360 = sbr.rel (%p358) target = $region20
        $region19: #{tpu_custom_call.1} parent=11 // pred_region
          _
        $region20: #{tpu_custom_call.1} parent=11 // pred_fallthru
          _
        // Predicated region
        $region21: #{tpu_custom_call.1} parent=11 // pred_check
          %p361 = pneg %p123
        $region22: #{tpu_custom_call.1} parent=11 // pred_check_branch
          %363 = sbr.rel (%p361) target = $region24
        $region23: #{tpu_custom_call.1} parent=11 // pred_region
          _
        $region24: #{tpu_custom_call.1} parent=11 // pred_fallthru
          _
        // Predicated region
        $region25: #{tpu_custom_call.1} parent=11 // pred_check
          %p364 = pneg %p144
        $region26: #{tpu_custom_call.1} parent=11 // pred_check_branch
          %366 = sbr.rel (%p364) target = $region28
        $region27: #{tpu_custom_call.1} parent=11 // pred_region
          _
        $region28: #{tpu_custom_call.1} parent=11 // pred_fallthru
          _
        // Predicated region
        $region29: #{tpu_custom_call.1} parent=11 // pred_check
          %p367 = pneg %p165
        $region30: #{tpu_custom_call.1} parent=11 // pred_check_branch
          %369 = sbr.rel (%p367) target = $region32
        $region31: #{tpu_custom_call.1} parent=11 // pred_region
          _
        $region32: #{tpu_custom_call.1} parent=11 // pred_fallthru
          _
        // Predicated region
        $region33: #{tpu_custom_call.1} parent=11 // pred_check
          %p370 = pneg %p186
        $region34: #{tpu_custom_call.1} parent=11 // pred_check_branch
          %372 = sbr.rel (%p370) target = $region36
        $region35: #{tpu_custom_call.1} parent=11 // pred_region
          _
        $region36: #{tpu_custom_call.1} parent=11 // pred_fallthru
          _
        // Predicated region
        $region37: #{tpu_custom_call.1} parent=11 // pred_check
          %p373 = pneg %p207
        $region38: #{tpu_custom_call.1} parent=11 // pred_check_branch
          %375 = sbr.rel (%p373) target = $region40
        $region39: #{tpu_custom_call.1} parent=11 // pred_region
          _
        $region40: #{tpu_custom_call.1} parent=11 // pred_fallthru
          _
        // Predicated region
        $region41: #{tpu_custom_call.1} parent=11 // pred_check
          %p376 = pneg %p228
        $region42: #{tpu_custom_call.1} parent=11 // pred_check_branch
          %378 = sbr.rel (%p376) target = $region44
        $region43: #{tpu_custom_call.1} parent=11 // pred_region
          _
        $region44: #{tpu_custom_call.1} parent=11 // pred_fallthru
          _
        // Predicated region
        $region45: #{tpu_custom_call.1} parent=11 // pred_check
          %p379 = pneg %p249
        $region46: #{tpu_custom_call.1} parent=11 // pred_check_branch
          %381 = sbr.rel (%p379) target = $region48
        $region47: #{tpu_custom_call.1} parent=11 // pred_region
          _
        $region48: #{tpu_custom_call.1} parent=11 // pred_fallthru
          _
        // Predicated region
        $region49: #{tpu_custom_call.1} parent=11 // pred_check
          %p382 = pneg %p270
        $region50: #{tpu_custom_call.1} parent=11 // pred_check_branch
          %384 = sbr.rel (%p382) target = $region52
        $region51: #{tpu_custom_call.1} parent=11 // pred_region
          _
        $region52: #{tpu_custom_call.1} parent=11 // pred_fallthru
          _
        // Predicated region
        $region53: #{tpu_custom_call.1} parent=11 // pred_check
          %p385 = pneg %p291
        $region54: #{tpu_custom_call.1} parent=11 // pred_check_branch
          %387 = sbr.rel (%p385) target = $region56
        $region55: #{tpu_custom_call.1} parent=11 // pred_region
          _
        $region56: #{tpu_custom_call.1} parent=11 // pred_fallthru
          _
        // Predicated region
        $region57: #{tpu_custom_call.1} parent=11 // pred_check
          %p388 = pneg %p312
        $region58: #{tpu_custom_call.1} parent=11 // pred_check_branch
          %390 = sbr.rel (%p388) target = $region60
        $region59: #{tpu_custom_call.1} parent=11 // pred_region
          _
        $region60: #{tpu_custom_call.1} parent=11 // pred_fallthru
          _
      $region12: #{tpu_custom_call.1} parent=5 // pred_fallthru
        _
      %p391 = scmp.lt.s32.totalorder %s22, 2
      // Predicated region
      $region61: #{tpu_custom_call.1} parent=5 // pred_check
        %p392 = pneg %p391
      $region62: #{tpu_custom_call.1} parent=5 // pred_check_branch
        %394 = sbr.rel (%p392) target = $region64
      $region63: #{tpu_custom_call.1} parent=5 // pred_region
        // Predicated region
        $region65: #{tpu_custom_call.1} parent=63 // pred_check
          %p395 = pneg %p54
        $region66: #{tpu_custom_call.1} parent=63 // pred_check_branch
          %397 = sbr.rel (%p395) target = $region68
        $region67: #{tpu_custom_call.1} parent=63 // pred_region
          %p398 = scmp.lt.s32.totalorder %s29, 1
          %s399 = scalar_select %p398, %s29, 1
          %s400 = smul.addr %s399, 8
          %s401 = scalar_lea.vmem %s0, %s400
        $region68: #{tpu_custom_call.1} parent=63 // pred_fallthru
          _
      $region64: #{tpu_custom_call.1} parent=5 // pred_fallthru
        _
      %p402 = scmp.le.s32.totalorder 1, %s22
      %p403 = scmp.lt.s32.totalorder %s22, 3
      %p404 = pnand %p402, %p403
      %p405 = pneg %p404
      // Predicated region
      $region69: #{tpu_custom_call.1} parent=5 // pred_check
        _
      $region70: #{tpu_custom_call.1} parent=5 // pred_check_branch
        %407 = sbr.rel (%p404) target = $region72
      $region71: #{tpu_custom_call.1} parent=5 // pred_region
        %s408 = ssub.s32 %s22, 1
        %p409 = scmp.lt.s32.totalorder %s31, 1
        %s410 = scalar_select %p409, %s31, 1
        %s411 = smul.addr %s410, 8
        %s412 = scalar_lea.vmem %s0, %s411
        %p413 = pneg %p60
        %p414 = pneg %p57
        %p415 = pneg %p81
        %p416 = pneg %p78
        %p417 = pneg %p102
        %p418 = pneg %p99
        %p419 = pneg %p123
        %p420 = pneg %p120
        %p421 = pneg %p144
        %p422 = pneg %p141
        %p423 = pneg %p165
        %p424 = pneg %p162
        %p425 = pneg %p186
        %p426 = pneg %p183
        %p427 = pneg %p207
        %p428 = pneg %p204
        %p429 = pneg %p228
        %p430 = pneg %p225
        %p431 = pneg %p249
        %p432 = pneg %p246
        %p433 = pneg %p270
        %p434 = pneg %p267
        %p435 = pneg %p291
        %p436 = pneg %p288
        %p437 = pneg %p312
        %p438 = pneg %p309
        %p439 = pneg %p340
        %p440 = pneg %p337
        %s441 = sand.u32 %s327, 1
        %s442 = scalar_lea.sflag [#allocation6], %s441
        %s443 = sand.u32 %s327, 1
        %s444 = smul.addr %s443, 8
        %s445 = scalar_lea.vmem [#allocation5], %s444
        %p446 = scmp.lt.s32.totalorder %s31, 1
        %s447 = scalar_select %p446, %s31, 1
        %s448 = smul.addr %s447, 8
        %s449 = scalar_lea.vmem %s0, %s448
        %v450 = vld [vmem:[%s5] sm:$0x1]
        %v451 = vld [vmem:[%s6] sm:$0x1]
        %v452 = vld [vmem:[%s7] sm:$0x1]
        %v453 = vld [vmem:[%s8] sm:$0x1]
        %v454 = vld [vmem:[%s4] sm:$0x1]
        %v455 = vld [vmem:[%s10] sm:$0x1]
        %v456 = vld [vmem:[%s12] sm:$0x1]
        %p457 = scmp.eq.s32.totalorder %s32, 0
        // Predicated region
        $region73: #{tpu_custom_call.1} parent=71 // pred_check
          %p458 = pneg %p457
        $region74: #{tpu_custom_call.1} parent=71 // pred_check_branch
          %460 = sbr.rel (%p458) target = $region76
        $region75: #{tpu_custom_call.1} parent=71 // pred_region
          %v461 = vld [vmem:[%s449] sm:$0xff]
          %vm462 = vcmask 261120
          %v463 = vsel %vm462, %v461, 0.0
          %464 = vadd.xlane.f32.xlu0 %v463
          %v465 = vpop.xlane.xlu0 %464
          %v466 = vrcp.pop 32.0
          %v467 = vmul.f32 %v465, %v466
          %v468 = vsub.f32 %v461, %v467
          %v469 = vmul.f32 %v468, %v468
          %v470 = vsel %vm462, %v469, 0.0
          %471 = vadd.xlane.f32.xlu0 %v470
          %v472 = vpop.xlane.xlu0 %471
          %v473 = vmul.f32 %v472, %v466
          %v474 = vadd.f32 %v473, 1e-05
          %v475 = vrsqrt.pop %v474
          %v476 = vmul.f32 %v468, %v475
          %v478 = vlaneseq
          %v479 = vshrl.u32 %v478, 7
          %v480 = vsub.s32 0, %v479
          %v481 = vrot.slane %v450, %v480
          %v483 = vmul.f32 %v476, %v481
          %v485 = vlaneseq
          %v486 = vshrl.u32 %v485, 7
          %v487 = vsub.s32 0, %v486
          %v488 = vrot.slane %v451, %v487
          %v490 = vadd.f32 %v483, %v488
          %v491 = vld [vmem:[%s1] sm:$0xff]
          %v492 = vld [vmem:[%s1 + $0x8] sm:$0xff]
          %v493 = vld [vmem:[%s1 + $0x10] sm:$0xff]
          %v494 = vld [vmem:[%s1 + $0x18] sm:$0xff]
          %v495 = vld [vmem:[%s2] sm:$0x1]
          %v497 = vlaneseq
          %v498 = vshrl.u32 %v497, 7
          %v499 = vsub.s32 0, %v498
          %v500 = vrot.slane %v495, %v499
          %v503 = vsel %vm462, %v490, 0
          %505 = vmatprep.subr.mxu0 0.0
          %506 = vmatpush1.msra.mxu0 0.0
          %507 = vmatprep.subr.mxu0 0.0
          %508 = vmatpush1.msra.mxu0 0.0
          %509 = vmatprep.subr.mxu0 0.0
          %510 = vmatpush1.msra.mxu0 0.0
          %511 = vmatprep.subr.mxu0 0.0
          %512 = vmatpush1.msra.mxu0 0.0
          %513 = vmatprep.subr.mxu0 0.0
          %514 = vmatpush1.msra.mxu0 0.0
          %515 = vmatprep.subr.mxu0 0.0
          %516 = vmatpush1.msra.mxu0 0.0
          %517 = vmatprep.subr.mxu0 0.0
          %518 = vmatpush1.msra.mxu0 0.0
          %519 = vmatprep.subr.mxu0 0.0
          %520 = vmatpush1.msra.mxu0 0.0
          %521 = vmatprep.subr.mxu0 0.0
          %522 = vmatpush1.msra.mxu0 0.0
          %523 = vmatprep.subr.mxu0 0.0
          %524 = vmatpush1.msra.mxu0 0.0
          %525 = vmatprep.subr.mxu0 0.0
          %526 = vmatpush1.msra.mxu0 0.0
          %527 = vmatprep.subr.mxu0 0.0
          %528 = vmatpush1.msra.mxu0 0.0
          %529 = vmatprep.subr.mxu0 0.0
          %530 = vmatpush1.msra.mxu0 %v494
          %531 = vmatprep.subr.mxu0 0.0
          %532 = vmatpush1.msra.mxu0 %v493
          %533 = vmatprep.subr.mxu0 0.0
          %534 = vmatpush1.msra.mxu0 %v492
          %535 = vmatprep.subr.mxu0 0.0
          %536 = vmatpush1.msra.mxu0 %v491
          %537 = vmatprep.subr.mxu0 0.0
          %538 = vmatpush2.msra.mxu0 0.0
          %539 = vmatprep.subr.mxu0 0.0
          %540 = vmatpush2.msra.mxu0 0.0
          %541 = vmatprep.subr.mxu0 0.0
          %542 = vmatpush2.msra.mxu0 0.0
          %543 = vmatprep.subr.mxu0 0.0
          %544 = vmatpush2.msra.mxu0 0.0
          %545 = vmatprep.subr.mxu0 0.0
          %546 = vmatpush2.msra.mxu0 0.0
          %547 = vmatprep.subr.mxu0 0.0
          %548 = vmatpush2.msra.mxu0 0.0
          %549 = vmatprep.subr.mxu0 0.0
          %550 = vmatpush2.msra.mxu0 0.0
          %551 = vmatprep.subr.mxu0 0.0
          %552 = vmatpush2.msra.mxu0 0.0
          %553 = vmatprep.subr.mxu0 0.0
          %554 = vmatpush2.msra.mxu0 0.0
          %555 = vmatprep.subr.mxu0 0.0
          %556 = vmatpush2.msra.mxu0 0.0
          %557 = vmatprep.subr.mxu0 0.0
          %558 = vmatpush2.msra.mxu0 0.0
          %559 = vmatprep.subr.mxu0 0.0
          %560 = vmatpush2.msra.mxu0 0.0
          %561 = vmatprep.subr.mxu0 0.0
          %562 = vmatpush2.msra.mxu0 0.0
          %563 = vmatprep.subr.mxu0 0.0
          %564 = vmatpush2.msra.mxu0 0.0
          %565 = vmatprep.subr.mxu0 0.0
          %566 = vmatpush2.msra.mxu0 0.0
          %567 = vmatprep.subr.mxu0 0.0
          %568 = vmatpush2.msra.mxu0 0.0
          %569 = vmatprep.mubr.f32.mxu0 0.0
          %570 = vmatmul.mubr.f32.gmra.mxu0 %v503
          %v571 = vpop.f32.mrf.mxu0
          %v572 = vadd.f32 %v500, %v571
          %v573 = vpop.f32.mrf.mxu0
          %574 = vdwg.mxu0
          %vm575 = vcmask 64512
          %576 = vst.msk [vmem:[#allocation2] sm:$0xff] %vm575, %v572
          %578 = vrot.lane.b32.xlu0 %v572, 96
          %v579 = vpop.permute.xlu0 %578
          %581 = vst.msk [vmem:[#allocation3] sm:$0xff] %vm575, %v579
          %582 = vrot.lane.b32.xlu0 %v572, 120
          %v583 = vpop.permute.xlu0 %582
          %s585 = scalar_lea.vmem [#allocation2], 8
          %586 = vst.msk [vmem:[%s585] sm:$0xff] %vm575, %v583
          %587 = vrot.lane.b32.xlu0 %v572, 88
          %v588 = vpop.permute.xlu0 %587
          %s590 = scalar_lea.vmem [#allocation3], 8
          %591 = vst.msk [vmem:[%s590] sm:$0xff] %vm575, %v588
          %592 = vrot.lane.b32.xlu0 %v572, 112
          %v593 = vpop.permute.xlu0 %592
          %s595 = scalar_lea.vmem [#allocation2], 16
          %596 = vst.msk [vmem:[%s595] sm:$0xff] %vm575, %v593
          %597 = vrot.lane.b32.xlu0 %v572, 80
          %v598 = vpop.permute.xlu0 %597
          %s600 = scalar_lea.vmem [#allocation3], 16
          %601 = vst.msk [vmem:[%s600] sm:$0xff] %vm575, %v598
          %602 = vrot.lane.b32.xlu0 %v572, 104
          %v603 = vpop.permute.xlu0 %602
          %s605 = scalar_lea.vmem [#allocation2], 24
          %606 = vst.msk [vmem:[%s605] sm:$0xff] %vm575, %v603
          %607 = vrot.lane.b32.xlu0 %v572, 72
          %v608 = vpop.permute.xlu0 %607
          %s610 = scalar_lea.vmem [#allocation3], 24
          %611 = vst.msk [vmem:[%s610] sm:$0xff] %vm575, %v608
        $region76: #{tpu_custom_call.1} parent=71 // pred_fallthru
          _
        %s612 = smul.u32 %s32, 8
        %s613 = scalar_lea.vmem %s449, %s612
        %v614 = vld [vmem:[%s613] sm:$0xff]
        %v615 = vld [vmem:[#allocation2] sm:$0xff]
        %v616 = vld [vmem:[#allocation2 + $0x8] sm:$0xff]
        %v617 = vld [vmem:[#allocation2 + $0x10] sm:$0xff]
        %v618 = vld [vmem:[#allocation2 + $0x18] sm:$0xff]
        %v619 = vld [vmem:[#allocation3] sm:$0xff]
        %v620 = vld [vmem:[#allocation3 + $0x8] sm:$0xff]
        %v621 = vld [vmem:[#allocation3 + $0x10] sm:$0xff]
        %v622 = vld [vmem:[#allocation3 + $0x18] sm:$0xff]
        %vm623 = vcmask 64512
        %v625 = vsel %vm623, %v615, 0
        %627 = vmatprep.subr.mxu0 0.0
        %628 = vmatpush1.xpose.msra.mxu0 0.0
        %629 = vmatprep.subr.mxu0 0.0
        %630 = vmatpush1.xpose.msra.mxu0 0.0
        %631 = vmatprep.subr.mxu0 0.0
        %632 = vmatpush1.xpose.msra.mxu0 0.0
        %633 = vmatprep.subr.mxu0 0.0
        %634 = vmatpush1.xpose.msra.mxu0 0.0
        %635 = vmatprep.subr.mxu0 0.0
        %636 = vmatpush1.xpose.msra.mxu0 0.0
        %637 = vmatprep.subr.mxu0 0.0
        %638 = vmatpush1.xpose.msra.mxu0 0.0
        %639 = vmatprep.subr.mxu0 0.0
        %640 = vmatpush1.xpose.msra.mxu0 0.0
        %641 = vmatprep.subr.mxu0 0.0
        %642 = vmatpush1.xpose.msra.mxu0 0.0
        %643 = vmatprep.subr.mxu0 0.0
        %644 = vmatpush1.xpose.msra.mxu0 0.0
        %645 = vmatprep.subr.mxu0 0.0
        %646 = vmatpush1.xpose.msra.mxu0 0.0
        %647 = vmatprep.subr.mxu0 0.0
        %648 = vmatpush1.xpose.msra.mxu0 0.0
        %649 = vmatprep.subr.mxu0 0.0
        %650 = vmatpush1.xpose.msra.mxu0 0.0
        %651 = vmatprep.subr.mxu0 0.0
        %652 = vmatpush1.xpose.msra.mxu0 0.0
        %653 = vmatprep.subr.mxu0 0.0
        %654 = vmatpush1.xpose.msra.mxu0 0.0
        %655 = vmatprep.subr.mxu0 0.0
        %656 = vmatpush1.xpose.msra.mxu0 0.0
        %657 = vmatprep.subr.mxu0 0.0
        %658 = vmatpush1.xpose.msra.mxu0 %v625
        %659 = vmatprep.subr.mxu0 0.0
        %660 = vmatpush2.xpose.msra.mxu0 0.0
        %661 = vmatprep.subr.mxu0 0.0
        %662 = vmatpush2.xpose.msra.mxu0 0.0
        %663 = vmatprep.subr.mxu0 0.0
        %664 = vmatpush2.xpose.msra.mxu0 0.0
        %665 = vmatprep.subr.mxu0 0.0
        %666 = vmatpush2.xpose.msra.mxu0 0.0
        %667 = vmatprep.subr.mxu0 0.0
        %668 = vmatpush2.xpose.msra.mxu0 0.0
        %669 = vmatprep.subr.mxu0 0.0
        %670 = vmatpush2.xpose.msra.mxu0 0.0
        %671 = vmatprep.subr.mxu0 0.0
        %672 = vmatpush2.xpose.msra.mxu0 0.0
        %673 = vmatprep.subr.mxu0 0.0
        %674 = vmatpush2.xpose.msra.mxu0 0.0
        %675 = vmatprep.subr.mxu0 0.0
        %676 = vmatpush2.xpose.msra.mxu0 0.0
        %677 = vmatprep.subr.mxu0 0.0
        %678 = vmatpush2.xpose.msra.mxu0 0.0
        %679 = vmatprep.subr.mxu0 0.0
        %680 = vmatpush2.xpose.msra.mxu0 0.0
        %681 = vmatprep.subr.mxu0 0.0
        %682 = vmatpush2.xpose.msra.mxu0 0.0
        %683 = vmatprep.subr.mxu0 0.0
        %684 = vmatpush2.xpose.msra.mxu0 0.0
        %685 = vmatprep.subr.mxu0 0.0
        %686 = vmatpush2.xpose.msra.mxu0 0.0
        %687 = vmatprep.subr.mxu0 0.0
        %688 = vmatpush2.xpose.msra.mxu0 0.0
        %689 = vmatprep.subr.mxu0 0.0
        %690 = vmatpush2.xpose.msra.mxu0 0.0
        %691 = vmatprep.mubr.f32.mxu0 0.0
        %692 = vmatmul.mubr.f32.gmra.mxu0 %v625
        %v693 = vpop.f32.mrf.mxu0
        %v694 = vadd.f32 0.0, %v693
        %v695 = vpop.f32.mrf.mxu0
        %696 = vdwg.mxu0
        %v698 = vsel %vm623, %v616, 0
        %700 = vmatprep.subr.mxu0 0.0
        %701 = vmatpush1.xpose.msra.mxu0 0.0
        %702 = vmatprep.subr.mxu0 0.0
        %703 = vmatpush1.xpose.msra.mxu0 0.0
        %704 = vmatprep.subr.mxu0 0.0
        %705 = vmatpush1.xpose.msra.mxu0 0.0
        %706 = vmatprep.subr.mxu0 0.0
        %707 = vmatpush1.xpose.msra.mxu0 0.0
        %708 = vmatprep.subr.mxu0 0.0
        %709 = vmatpush1.xpose.msra.mxu0 0.0
        %710 = vmatprep.subr.mxu0 0.0
        %711 = vmatpush1.xpose.msra.mxu0 0.0
        %712 = vmatprep.subr.mxu0 0.0
        %713 = vmatpush1.xpose.msra.mxu0 0.0
        %714 = vmatprep.subr.mxu0 0.0
        %715 = vmatpush1.xpose.msra.mxu0 0.0
        %716 = vmatprep.subr.mxu0 0.0
        %717 = vmatpush1.xpose.msra.mxu0 0.0
        %718 = vmatprep.subr.mxu0 0.0
        %719 = vmatpush1.xpose.msra.mxu0 0.0
        %720 = vmatprep.subr.mxu0 0.0
        %721 = vmatpush1.xpose.msra.mxu0 0.0
        %722 = vmatprep.subr.mxu0 0.0
        %723 = vmatpush1.xpose.msra.mxu0 0.0
        %724 = vmatprep.subr.mxu0 0.0
        %725 = vmatpush1.xpose.msra.mxu0 0.0
        %726 = vmatprep.subr.mxu0 0.0
        %727 = vmatpush1.xpose.msra.mxu0 0.0
        %728 = vmatprep.subr.mxu0 0.0
        %729 = vmatpush1.xpose.msra.mxu0 0.0
        %730 = vmatprep.subr.mxu0 0.0
        %731 = vmatpush1.xpose.msra.mxu0 %v698
        %732 = vmatprep.subr.mxu0 0.0
        %733 = vmatpush2.xpose.msra.mxu0 0.0
        %734 = vmatprep.subr.mxu0 0.0
        %735 = vmatpush2.xpose.msra.mxu0 0.0
        %736 = vmatprep.subr.mxu0 0.0
        %737 = vmatpush2.xpose.msra.mxu0 0.0
        %738 = vmatprep.subr.mxu0 0.0
        %739 = vmatpush2.xpose.msra.mxu0 0.0
        %740 = vmatprep.subr.mxu0 0.0
        %741 = vmatpush2.xpose.msra.mxu0 0.0
        %742 = vmatprep.subr.mxu0 0.0
        %743 = vmatpush2.xpose.msra.mxu0 0.0
        %744 = vmatprep.subr.mxu0 0.0
        %745 = vmatpush2.xpose.msra.mxu0 0.0
        %746 = vmatprep.subr.mxu0 0.0
        %747 = vmatpush2.xpose.msra.mxu0 0.0
        %748 = vmatprep.subr.mxu0 0.0
        %749 = vmatpush2.xpose.msra.mxu0 0.0
        %750 = vmatprep.subr.mxu0 0.0
        %751 = vmatpush2.xpose.msra.mxu0 0.0
        %752 = vmatprep.subr.mxu0 0.0
        %753 = vmatpush2.xpose.msra.mxu0 0.0
        %754 = vmatprep.subr.mxu0 0.0
        %755 = vmatpush2.xpose.msra.mxu0 0.0
        %756 = vmatprep.subr.mxu0 0.0
        %757 = vmatpush2.xpose.msra.mxu0 0.0
        %758 = vmatprep.subr.mxu0 0.0
        %759 = vmatpush2.xpose.msra.mxu0 0.0
        %760 = vmatprep.subr.mxu0 0.0
        %761 = vmatpush2.xpose.msra.mxu0 0.0
        %762 = vmatprep.subr.mxu0 0.0
        %763 = vmatpush2.xpose.msra.mxu0 0.0
        %764 = vmatprep.mubr.f32.mxu0 0.0
        %765 = vmatmul.mubr.f32.gmra.mxu0 %v698
        %v766 = vpop.f32.mrf.mxu0
        %v767 = vadd.f32 0.0, %v766
        %v768 = vpop.f32.mrf.mxu0
        %769 = vdwg.mxu0
        %v771 = vsel %vm623, %v617, 0
        %773 = vmatprep.subr.mxu0 0.0
        %774 = vmatpush1.xpose.msra.mxu0 0.0
        %775 = vmatprep.subr.mxu0 0.0
        %776 = vmatpush1.xpose.msra.mxu0 0.0
        %777 = vmatprep.subr.mxu0 0.0
        %778 = vmatpush1.xpose.msra.mxu0 0.0
        %779 = vmatprep.subr.mxu0 0.0
        %780 = vmatpush1.xpose.msra.mxu0 0.0
        %781 = vmatprep.subr.mxu0 0.0
        %782 = vmatpush1.xpose.msra.mxu0 0.0
        %783 = vmatprep.subr.mxu0 0.0
        %784 = vmatpush1.xpose.msra.mxu0 0.0
        %785 = vmatprep.subr.mxu0 0.0
        %786 = vmatpush1.xpose.msra.mxu0 0.0
        %787 = vmatprep.subr.mxu0 0.0
        %788 = vmatpush1.xpose.msra.mxu0 0.0
        %789 = vmatprep.subr.mxu0 0.0
        %790 = vmatpush1.xpose.msra.mxu0 0.0
        %791 = vmatprep.subr.mxu0 0.0
        %792 = vmatpush1.xpose.msra.mxu0 0.0
        %793 = vmatprep.subr.mxu0 0.0
        %794 = vmatpush1.xpose.msra.mxu0 0.0
        %795 = vmatprep.subr.mxu0 0.0
        %796 = vmatpush1.xpose.msra.mxu0 0.0
        %797 = vmatprep.subr.mxu0 0.0
        %798 = vmatpush1.xpose.msra.mxu0 0.0
        %799 = vmatprep.subr.mxu0 0.0
        %800 = vmatpush1.xpose.msra.mxu0 0.0
        %801 = vmatprep.subr.mxu0 0.0
        %802 = vmatpush1.xpose.msra.mxu0 0.0
        %803 = vmatprep.subr.mxu0 0.0
        %804 = vmatpush1.xpose.msra.mxu0 %v771
        %805 = vmatprep.subr.mxu0 0.0
        %806 = vmatpush2.xpose.msra.mxu0 0.0
        %807 = vmatprep.subr.mxu0 0.0
        %808 = vmatpush2.xpose.msra.mxu0 0.0
        %809 = vmatprep.subr.mxu0 0.0
        %810 = vmatpush2.xpose.msra.mxu0 0.0
        %811 = vmatprep.subr.mxu0 0.0
        %812 = vmatpush2.xpose.msra.mxu0 0.0
        %813 = vmatprep.subr.mxu0 0.0
        %814 = vmatpush2.xpose.msra.mxu0 0.0
        %815 = vmatprep.subr.mxu0 0.0
        %816 = vmatpush2.xpose.msra.mxu0 0.0
        %817 = vmatprep.subr.mxu0 0.0
        %818 = vmatpush2.xpose.msra.mxu0 0.0
        %819 = vmatprep.subr.mxu0 0.0
        %820 = vmatpush2.xpose.msra.mxu0 0.0
        %821 = vmatprep.subr.mxu0 0.0
        %822 = vmatpush2.xpose.msra.mxu0 0.0
        %823 = vmatprep.subr.mxu0 0.0
        %824 = vmatpush2.xpose.msra.mxu0 0.0
        %825 = vmatprep.subr.mxu0 0.0
        %826 = vmatpush2.xpose.msra.mxu0 0.0
        %827 = vmatprep.subr.mxu0 0.0
        %828 = vmatpush2.xpose.msra.mxu0 0.0
        %829 = vmatprep.subr.mxu0 0.0
        %830 = vmatpush2.xpose.msra.mxu0 0.0
        %831 = vmatprep.subr.mxu0 0.0
        %832 = vmatpush2.xpose.msra.mxu0 0.0
        %833 = vmatprep.subr.mxu0 0.0
        %834 = vmatpush2.xpose.msra.mxu0 0.0
        %835 = vmatprep.subr.mxu0 0.0
        %836 = vmatpush2.xpose.msra.mxu0 0.0
        %837 = vmatprep.mubr.f32.mxu0 0.0
        %838 = vmatmul.mubr.f32.gmra.mxu0 %v771
        %v839 = vpop.f32.mrf.mxu0
        %v840 = vadd.f32 0.0, %v839
        %v841 = vpop.f32.mrf.mxu0
        %842 = vdwg.mxu0
        %v844 = vsel %vm623, %v618, 0
        %846 = vmatprep.subr.mxu0 0.0
        %847 = vmatpush1.xpose.msra.mxu0 0.0
        %848 = vmatprep.subr.mxu0 0.0
        %849 = vmatpush1.xpose.msra.mxu0 0.0
        %850 = vmatprep.subr.mxu0 0.0
        %851 = vmatpush1.xpose.msra.mxu0 0.0
        %852 = vmatprep.subr.mxu0 0.0
        %853 = vmatpush1.xpose.msra.mxu0 0.0
        %854 = vmatprep.subr.mxu0 0.0
        %855 = vmatpush1.xpose.msra.mxu0 0.0
        %856 = vmatprep.subr.mxu0 0.0
        %857 = vmatpush1.xpose.msra.mxu0 0.0
        %858 = vmatprep.subr.mxu0 0.0
        %859 = vmatpush1.xpose.msra.mxu0 0.0
        %860 = vmatprep.subr.mxu0 0.0
        %861 = vmatpush1.xpose.msra.mxu0 0.0
        %862 = vmatprep.subr.mxu0 0.0
        %863 = vmatpush1.xpose.msra.mxu0 0.0
        %864 = vmatprep.subr.mxu0 0.0
        %865 = vmatpush1.xpose.msra.mxu0 0.0
        %866 = vmatprep.subr.mxu0 0.0
        %867 = vmatpush1.xpose.msra.mxu0 0.0
        %868 = vmatprep.subr.mxu0 0.0
        %869 = vmatpush1.xpose.msra.mxu0 0.0
        %870 = vmatprep.subr.mxu0 0.0
        %871 = vmatpush1.xpose.msra.mxu0 0.0
        %872 = vmatprep.subr.mxu0 0.0
        %873 = vmatpush1.xpose.msra.mxu0 0.0
        %874 = vmatprep.subr.mxu0 0.0
        %875 = vmatpush1.xpose.msra.mxu0 0.0
        %876 = vmatprep.subr.mxu0 0.0
        %877 = vmatpush1.xpose.msra.mxu0 %v844
        %878 = vmatprep.subr.mxu0 0.0
        %879 = vmatpush2.xpose.msra.mxu0 0.0
        %880 = vmatprep.subr.mxu0 0.0
        %881 = vmatpush2.xpose.msra.mxu0 0.0
        %882 = vmatprep.subr.mxu0 0.0
        %883 = vmatpush2.xpose.msra.mxu0 0.0
        %884 = vmatprep.subr.mxu0 0.0
        %885 = vmatpush2.xpose.msra.mxu0 0.0
        %886 = vmatprep.subr.mxu0 0.0
        %887 = vmatpush2.xpose.msra.mxu0 0.0
        %888 = vmatprep.subr.mxu0 0.0
        %889 = vmatpush2.xpose.msra.mxu0 0.0
        %890 = vmatprep.subr.mxu0 0.0
        %891 = vmatpush2.xpose.msra.mxu0 0.0
        %892 = vmatprep.subr.mxu0 0.0
        %893 = vmatpush2.xpose.msra.mxu0 0.0
        %894 = vmatprep.subr.mxu0 0.0
        %895 = vmatpush2.xpose.msra.mxu0 0.0
        %896 = vmatprep.subr.mxu0 0.0
        %897 = vmatpush2.xpose.msra.mxu0 0.0
        %898 = vmatprep.subr.mxu0 0.0
        %899 = vmatpush2.xpose.msra.mxu0 0.0
        %900 = vmatprep.subr.mxu0 0.0
        %901 = vmatpush2.xpose.msra.mxu0 0.0
        %902 = vmatprep.subr.mxu0 0.0
        %903 = vmatpush2.xpose.msra.mxu0 0.0
        %904 = vmatprep.subr.mxu0 0.0
        %905 = vmatpush2.xpose.msra.mxu0 0.0
        %906 = vmatprep.subr.mxu0 0.0
        %907 = vmatpush2.xpose.msra.mxu0 0.0
        %908 = vmatprep.subr.mxu0 0.0
        %909 = vmatpush2.xpose.msra.mxu0 0.0
        %910 = vmatprep.mubr.f32.mxu0 0.0
        %911 = vmatmul.mubr.f32.gmra.mxu0 %v844
        %v912 = vpop.f32.mrf.mxu0
        %v913 = vadd.f32 0.0, %v912
        %v914 = vpop.f32.mrf.mxu0
        %915 = vdwg.mxu0
        %v916 = vmul.f32 %v694, 0.17677669
        %v917 = vmul.f32 %v767, 0.17677669
        %v918 = vmul.f32 %v840, 0.17677669
        %v919 = vmul.f32 %v913, 0.17677669
        %v920 = vsel %vm623, %v916, -inf
        %921 = vmax.xlane.f32.xlu0 %v920
        %v922 = vpop.xlane.xlu0 %921
        %v923 = vsel %vm623, %v917, -inf
        %924 = vmax.xlane.f32.xlu0 %v923
        %v925 = vpop.xlane.xlu0 %924
        %v926 = vsel %vm623, %v918, -inf
        %927 = vmax.xlane.f32.xlu0 %v926
        %v928 = vpop.xlane.xlu0 %927
        %v929 = vsel %vm623, %v919, -inf
        %930 = vmax.xlane.f32.xlu0 %v929
        %v931 = vpop.xlane.xlu0 %930
        %v932 = vsub.f32 %v916, %v922
        %v933 = vsub.f32 %v917, %v925
        %v934 = vsub.f32 %v918, %v928
        %v935 = vsub.f32 %v919, %v931
        %v936 = vmul.f32 %v932, 1.442695
        %v937 = vpow.pop %v936
        %v938 = vmul.f32 %v933, 1.442695
        %v939 = vpow.pop %v938
        %v940 = vmul.f32 %v934, 1.442695
        %v941 = vpow.pop %v940
        %v942 = vmul.f32 %v935, 1.442695
        %v943 = vpow.pop %v942
        %v944 = vsel %vm623, %v937, 0.0
        %945 = vadd.xlane.f32.xlu0 %v944
        %v946 = vpop.xlane.xlu0 %945
        %v947 = vsel %vm623, %v939, 0.0
        %948 = vadd.xlane.f32.xlu0 %v947
        %v949 = vpop.xlane.xlu0 %948
        %v950 = vsel %vm623, %v941, 0.0
        %951 = vadd.xlane.f32.xlu0 %v950
        %v952 = vpop.xlane.xlu0 %951
        %v953 = vsel %vm623, %v943, 0.0
        %954 = vadd.xlane.f32.xlu0 %v953
        %v955 = vpop.xlane.xlu0 %954
        %v956 = vrcp.pop %v946
        %v957 = vrcp.pop %v949
        %v958 = vrcp.pop %v952
        %v959 = vrcp.pop %v955
        %v960 = vmul.f32 %v937, %v956
        %v961 = vmul.f32 %v939, %v957
        %v962 = vmul.f32 %v941, %v958
        %v963 = vmul.f32 %v943, %v959
        %v965 = vsel %vm623, %v960, 0
        %967 = vmatprep.subr.mxu0 0.0
        %968 = vmatpush1.msra.mxu0 0.0
        %969 = vmatprep.subr.mxu0 0.0
        %970 = vmatpush1.msra.mxu0 0.0
        %971 = vmatprep.subr.mxu0 0.0
        %972 = vmatpush1.msra.mxu0 0.0
        %973 = vmatprep.subr.mxu0 0.0
        %974 = vmatpush1.msra.mxu0 0.0
        %975 = vmatprep.subr.mxu0 0.0
        %976 = vmatpush1.msra.mxu0 0.0
        %977 = vmatprep.subr.mxu0 0.0
        %978 = vmatpush1.msra.mxu0 0.0
        %979 = vmatprep.subr.mxu0 0.0
        %980 = vmatpush1.msra.mxu0 0.0
        %981 = vmatprep.subr.mxu0 0.0
        %982 = vmatpush1.msra.mxu0 0.0
        %983 = vmatprep.subr.mxu0 0.0
        %984 = vmatpush1.msra.mxu0 0.0
        %985 = vmatprep.subr.mxu0 0.0
        %986 = vmatpush1.msra.mxu0 0.0
        %987 = vmatprep.subr.mxu0 0.0
        %988 = vmatpush1.msra.mxu0 0.0
        %989 = vmatprep.subr.mxu0 0.0
        %990 = vmatpush1.msra.mxu0 0.0
        %991 = vmatprep.subr.mxu0 0.0
        %992 = vmatpush1.msra.mxu0 0.0
        %993 = vmatprep.subr.mxu0 0.0
        %994 = vmatpush1.msra.mxu0 0.0
        %995 = vmatprep.subr.mxu0 0.0
        %996 = vmatpush1.msra.mxu0 0.0
        %997 = vmatprep.subr.mxu0 0.0
        %998 = vmatpush1.msra.mxu0 %v619
        %999 = vmatprep.subr.mxu0 0.0
        %1000 = vmatpush2.msra.mxu0 0.0
        %1001 = vmatprep.subr.mxu0 0.0
        %1002 = vmatpush2.msra.mxu0 0.0
        %1003 = vmatprep.subr.mxu0 0.0
        %1004 = vmatpush2.msra.mxu0 0.0
        %1005 = vmatprep.subr.mxu0 0.0
        %1006 = vmatpush2.msra.mxu0 0.0
        %1007 = vmatprep.subr.mxu0 0.0
        %1008 = vmatpush2.msra.mxu0 0.0
        %1009 = vmatprep.subr.mxu0 0.0
        %1010 = vmatpush2.msra.mxu0 0.0
        %1011 = vmatprep.subr.mxu0 0.0
        %1012 = vmatpush2.msra.mxu0 0.0
        %1013 = vmatprep.subr.mxu0 0.0
        %1014 = vmatpush2.msra.mxu0 0.0
        %1015 = vmatprep.subr.mxu0 0.0
        %1016 = vmatpush2.msra.mxu0 0.0
        %1017 = vmatprep.subr.mxu0 0.0
        %1018 = vmatpush2.msra.mxu0 0.0
        %1019 = vmatprep.subr.mxu0 0.0
        %1020 = vmatpush2.msra.mxu0 0.0
        %1021 = vmatprep.subr.mxu0 0.0
        %1022 = vmatpush2.msra.mxu0 0.0
        %1023 = vmatprep.subr.mxu0 0.0
        %1024 = vmatpush2.msra.mxu0 0.0
        %1025 = vmatprep.subr.mxu0 0.0
        %1026 = vmatpush2.msra.mxu0 0.0
        %1027 = vmatprep.subr.mxu0 0.0
        %1028 = vmatpush2.msra.mxu0 0.0
        %1029 = vmatprep.subr.mxu0 0.0
        %1030 = vmatpush2.msra.mxu0 0.0
        %1031 = vmatprep.mubr.f32.mxu0 0.0
        %1032 = vmatmul.mubr.f32.gmra.mxu0 %v965
        %v1033 = vpop.f32.mrf.mxu0
        %v1034 = vadd.f32 0.0, %v1033
        %v1035 = vpop.f32.mrf.mxu0
        %1036 = vdwg.mxu0
        %v1038 = vsel %vm623, %v961, 0
        %1040 = vmatprep.subr.mxu0 0.0
        %1041 = vmatpush1.msra.mxu0 0.0
        %1042 = vmatprep.subr.mxu0 0.0
        %1043 = vmatpush1.msra.mxu0 0.0
        %1044 = vmatprep.subr.mxu0 0.0
        %1045 = vmatpush1.msra.mxu0 0.0
        %1046 = vmatprep.subr.mxu0 0.0
        %1047 = vmatpush1.msra.mxu0 0.0
        %1048 = vmatprep.subr.mxu0 0.0
        %1049 = vmatpush1.msra.mxu0 0.0
        %1050 = vmatprep.subr.mxu0 0.0
        %1051 = vmatpush1.msra.mxu0 0.0
        %1052 = vmatprep.subr.mxu0 0.0
        %1053 = vmatpush1.msra.mxu0 0.0
        %1054 = vmatprep.subr.mxu0 0.0
        %1055 = vmatpush1.msra.mxu0 0.0
        %1056 = vmatprep.subr.mxu0 0.0
        %1057 = vmatpush1.msra.mxu0 0.0
        %1058 = vmatprep.subr.mxu0 0.0
        %1059 = vmatpush1.msra.mxu0 0.0
        %1060 = vmatprep.subr.mxu0 0.0
        %1061 = vmatpush1.msra.mxu0 0.0
        %1062 = vmatprep.subr.mxu0 0.0
        %1063 = vmatpush1.msra.mxu0 0.0
        %1064 = vmatprep.subr.mxu0 0.0
        %1065 = vmatpush1.msra.mxu0 0.0
        %1066 = vmatprep.subr.mxu0 0.0
        %1067 = vmatpush1.msra.mxu0 0.0
        %1068 = vmatprep.subr.mxu0 0.0
        %1069 = vmatpush1.msra.mxu0 0.0
        %1070 = vmatprep.subr.mxu0 0.0
        %1071 = vmatpush1.msra.mxu0 %v620
        %1072 = vmatprep.subr.mxu0 0.0
        %1073 = vmatpush2.msra.mxu0 0.0
        %1074 = vmatprep.subr.mxu0 0.0
        %1075 = vmatpush2.msra.mxu0 0.0
        %1076 = vmatprep.subr.mxu0 0.0
        %1077 = vmatpush2.msra.mxu0 0.0
        %1078 = vmatprep.subr.mxu0 0.0
        %1079 = vmatpush2.msra.mxu0 0.0
        %1080 = vmatprep.subr.mxu0 0.0
        %1081 = vmatpush2.msra.mxu0 0.0
        %1082 = vmatprep.subr.mxu0 0.0
        %1083 = vmatpush2.msra.mxu0 0.0
        %1084 = vmatprep.subr.mxu0 0.0
        %1085 = vmatpush2.msra.mxu0 0.0
        %1086 = vmatprep.subr.mxu0 0.0
        %1087 = vmatpush2.msra.mxu0 0.0
        %1088 = vmatprep.subr.mxu0 0.0
        %1089 = vmatpush2.msra.mxu0 0.0
        %1090 = vmatprep.subr.mxu0 0.0
        %1091 = vmatpush2.msra.mxu0 0.0
        %1092 = vmatprep.subr.mxu0 0.0
        %1093 = vmatpush2.msra.mxu0 0.0
        %1094 = vmatprep.subr.mxu0 0.0
        %1095 = vmatpush2.msra.mxu0 0.0
        %1096 = vmatprep.subr.mxu0 0.0
        %1097 = vmatpush2.msra.mxu0 0.0
        %1098 = vmatprep.subr.mxu0 0.0
        %1099 = vmatpush2.msra.mxu0 0.0
        %1100 = vmatprep.subr.mxu0 0.0
        %1101 = vmatpush2.msra.mxu0 0.0
        %1102 = vmatprep.subr.mxu0 0.0
        %1103 = vmatpush2.msra.mxu0 0.0
        %1104 = vmatprep.mubr.f32.mxu0 0.0
        %1105 = vmatmul.mubr.f32.gmra.mxu0 %v1038
        %v1106 = vpop.f32.mrf.mxu0
        %v1107 = vadd.f32 0.0, %v1106
        %v1108 = vpop.f32.mrf.mxu0
        %1109 = vdwg.mxu0
        %v1111 = vsel %vm623, %v962, 0
        %1113 = vmatprep.subr.mxu0 0.0
        %1114 = vmatpush1.msra.mxu0 0.0
        %1115 = vmatprep.subr.mxu0 0.0
        %1116 = vmatpush1.msra.mxu0 0.0
        %1117 = vmatprep.subr.mxu0 0.0
        %1118 = vmatpush1.msra.mxu0 0.0
        %1119 = vmatprep.subr.mxu0 0.0
        %1120 = vmatpush1.msra.mxu0 0.0
        %1121 = vmatprep.subr.mxu0 0.0
        %1122 = vmatpush1.msra.mxu0 0.0
        %1123 = vmatprep.subr.mxu0 0.0
        %1124 = vmatpush1.msra.mxu0 0.0
        %1125 = vmatprep.subr.mxu0 0.0
        %1126 = vmatpush1.msra.mxu0 0.0
        %1127 = vmatprep.subr.mxu0 0.0
        %1128 = vmatpush1.msra.mxu0 0.0
        %1129 = vmatprep.subr.mxu0 0.0
        %1130 = vmatpush1.msra.mxu0 0.0
        %1131 = vmatprep.subr.mxu0 0.0
        %1132 = vmatpush1.msra.mxu0 0.0
        %1133 = vmatprep.subr.mxu0 0.0
        %1134 = vmatpush1.msra.mxu0 0.0
        %1135 = vmatprep.subr.mxu0 0.0
        %1136 = vmatpush1.msra.mxu0 0.0
        %1137 = vmatprep.subr.mxu0 0.0
        %1138 = vmatpush1.msra.mxu0 0.0
        %1139 = vmatprep.subr.mxu0 0.0
        %1140 = vmatpush1.msra.mxu0 0.0
        %1141 = vmatprep.subr.mxu0 0.0
        %1142 = vmatpush1.msra.mxu0 0.0
        %1143 = vmatprep.subr.mxu0 0.0
        %1144 = vmatpush1.msra.mxu0 %v621
        %1145 = vmatprep.subr.mxu0 0.0
        %1146 = vmatpush2.msra.mxu0 0.0
        %1147 = vmatprep.subr.mxu0 0.0
        %1148 = vmatpush2.msra.mxu0 0.0
        %1149 = vmatprep.subr.mxu0 0.0
        %1150 = vmatpush2.msra.mxu0 0.0
        %1151 = vmatprep.subr.mxu0 0.0
        %1152 = vmatpush2.msra.mxu0 0.0
        %1153 = vmatprep.subr.mxu0 0.0
        %1154 = vmatpush2.msra.mxu0 0.0
        %1155 = vmatprep.subr.mxu0 0.0
        %1156 = vmatpush2.msra.mxu0 0.0
        %1157 = vmatprep.subr.mxu0 0.0
        %1158 = vmatpush2.msra.mxu0 0.0
        %1159 = vmatprep.subr.mxu0 0.0
        %1160 = vmatpush2.msra.mxu0 0.0
        %1161 = vmatprep.subr.mxu0 0.0
        %1162 = vmatpush2.msra.mxu0 0.0
        %1163 = vmatprep.subr.mxu0 0.0
        %1164 = vmatpush2.msra.mxu0 0.0
        %1165 = vmatprep.subr.mxu0 0.0
        %1166 = vmatpush2.msra.mxu0 0.0
        %1167 = vmatprep.subr.mxu0 0.0
        %1168 = vmatpush2.msra.mxu0 0.0
        %1169 = vmatprep.subr.mxu0 0.0
        %1170 = vmatpush2.msra.mxu0 0.0
        %1171 = vmatprep.subr.mxu0 0.0
        %1172 = vmatpush2.msra.mxu0 0.0
        %1173 = vmatprep.subr.mxu0 0.0
        %1174 = vmatpush2.msra.mxu0 0.0
        %1175 = vmatprep.subr.mxu0 0.0
        %1176 = vmatpush2.msra.mxu0 0.0
        %1177 = vmatprep.mubr.f32.mxu0 0.0
        %1178 = vmatmul.mubr.f32.gmra.mxu0 %v1111
        %v1179 = vpop.f32.mrf.mxu0
        %v1180 = vadd.f32 0.0, %v1179
        %v1181 = vpop.f32.mrf.mxu0
        %1182 = vdwg.mxu0
        %v1184 = vsel %vm623, %v963, 0
        %1186 = vmatprep.subr.mxu0 0.0
        %1187 = vmatpush1.msra.mxu0 0.0
        %1188 = vmatprep.subr.mxu0 0.0
        %1189 = vmatpush1.msra.mxu0 0.0
        %1190 = vmatprep.subr.mxu0 0.0
        %1191 = vmatpush1.msra.mxu0 0.0
        %1192 = vmatprep.subr.mxu0 0.0
        %1193 = vmatpush1.msra.mxu0 0.0
        %1194 = vmatprep.subr.mxu0 0.0
        %1195 = vmatpush1.msra.mxu0 0.0
        %1196 = vmatprep.subr.mxu0 0.0
        %1197 = vmatpush1.msra.mxu0 0.0
        %1198 = vmatprep.subr.mxu0 0.0
        %1199 = vmatpush1.msra.mxu0 0.0
        %1200 = vmatprep.subr.mxu0 0.0
        %1201 = vmatpush1.msra.mxu0 0.0
        %1202 = vmatprep.subr.mxu0 0.0
        %1203 = vmatpush1.msra.mxu0 0.0
        %1204 = vmatprep.subr.mxu0 0.0
        %1205 = vmatpush1.msra.mxu0 0.0
        %1206 = vmatprep.subr.mxu0 0.0
        %1207 = vmatpush1.msra.mxu0 0.0
        %1208 = vmatprep.subr.mxu0 0.0
        %1209 = vmatpush1.msra.mxu0 0.0
        %1210 = vmatprep.subr.mxu0 0.0
        %1211 = vmatpush1.msra.mxu0 0.0
        %1212 = vmatprep.subr.mxu0 0.0
        %1213 = vmatpush1.msra.mxu0 0.0
        %1214 = vmatprep.subr.mxu0 0.0
        %1215 = vmatpush1.msra.mxu0 0.0
        %1216 = vmatprep.subr.mxu0 0.0
        %1217 = vmatpush1.msra.mxu0 %v622
        %1218 = vmatprep.subr.mxu0 0.0
        %1219 = vmatpush2.msra.mxu0 0.0
        %1220 = vmatprep.subr.mxu0 0.0
        %1221 = vmatpush2.msra.mxu0 0.0
        %1222 = vmatprep.subr.mxu0 0.0
        %1223 = vmatpush2.msra.mxu0 0.0
        %1224 = vmatprep.subr.mxu0 0.0
        %1225 = vmatpush2.msra.mxu0 0.0
        %1226 = vmatprep.subr.mxu0 0.0
        %1227 = vmatpush2.msra.mxu0 0.0
        %1228 = vmatprep.subr.mxu0 0.0
        %1229 = vmatpush2.msra.mxu0 0.0
        %1230 = vmatprep.subr.mxu0 0.0
        %1231 = vmatpush2.msra.mxu0 0.0
        %1232 = vmatprep.subr.mxu0 0.0
        %1233 = vmatpush2.msra.mxu0 0.0
        %1234 = vmatprep.subr.mxu0 0.0
        %1235 = vmatpush2.msra.mxu0 0.0
        %1236 = vmatprep.subr.mxu0 0.0
        %1237 = vmatpush2.msra.mxu0 0.0
        %1238 = vmatprep.subr.mxu0 0.0
        %1239 = vmatpush2.msra.mxu0 0.0
        %1240 = vmatprep.subr.mxu0 0.0
        %1241 = vmatpush2.msra.mxu0 0.0
        %1242 = vmatprep.subr.mxu0 0.0
        %1243 = vmatpush2.msra.mxu0 0.0
        %1244 = vmatprep.subr.mxu0 0.0
        %1245 = vmatpush2.msra.mxu0 0.0
        %1246 = vmatprep.subr.mxu0 0.0
        %1247 = vmatpush2.msra.mxu0 0.0
        %1248 = vmatprep.subr.mxu0 0.0
        %1249 = vmatpush2.msra.mxu0 0.0
        %1250 = vmatprep.mubr.f32.mxu0 0.0
        %1251 = vmatmul.mubr.f32.gmra.mxu0 %v1184
        %v1252 = vpop.f32.mrf.mxu0
        %v1253 = vadd.f32 0.0, %v1252
        %v1254 = vpop.f32.mrf.mxu0
        %1255 = vdwg.mxu0
        %1256 = vst.msk [vmem:[#allocation4] sm:$0xff] %vm623, %v1034
        %1258 = vrot.lane.b32.xlu0 %v1107, 8
        %v1259 = vpop.permute.xlu0 %1258
        %vm1261 = vcmask 130112
        %1262 = vst.msk [vmem:[#allocation4] sm:$0xff] %vm1261, %v1259
        %1264 = vrot.lane.b32.xlu0 %v1180, 16
        %v1265 = vpop.permute.xlu0 %1264
        %vm1267 = vcmask 195712
        %1268 = vst.msk [vmem:[#allocation4] sm:$0xff] %vm1267, %v1265
        %1270 = vrot.lane.b32.xlu0 %v1253, 24
        %v1271 = vpop.permute.xlu0 %1270
        %vm1273 = vcmask 261312
        %1274 = vst.msk [vmem:[#allocation4] sm:$0xff] %vm1273, %v1271
        %v1275 = vld [vmem:[#allocation4] sm:$0xff]
        %v1276 = vld [vmem:[%s3] sm:$0xff]
        %v1277 = vld [vmem:[%s3 + $0x8] sm:$0xff]
        %v1278 = vld [vmem:[%s3 + $0x10] sm:$0xff]
        %v1279 = vld [vmem:[%s3 + $0x18] sm:$0xff]
        %v1281 = vlaneseq
        %v1282 = vshrl.u32 %v1281, 7
        %v1283 = vsub.s32 0, %v1282
        %v1284 = vrot.slane %v454, %v1283
        %vm1286 = vcmask 261120
        %v1288 = vsel %vm1286, %v1275, 0
        %1290 = vmatprep.subr.mxu0 0.0
        %1291 = vmatpush1.msra.mxu0 0.0
        %1292 = vmatprep.subr.mxu0 0.0
        %1293 = vmatpush1.msra.mxu0 0.0
        %1294 = vmatprep.subr.mxu0 0.0
        %1295 = vmatpush1.msra.mxu0 0.0
        %1296 = vmatprep.subr.mxu0 0.0
        %1297 = vmatpush1.msra.mxu0 0.0
        %1298 = vmatprep.subr.mxu0 0.0
        %1299 = vmatpush1.msra.mxu0 0.0
        %1300 = vmatprep.subr.mxu0 0.0
        %1301 = vmatpush1.msra.mxu0 0.0
        %1302 = vmatprep.subr.mxu0 0.0
        %1303 = vmatpush1.msra.mxu0 0.0
        %1304 = vmatprep.subr.mxu0 0.0
        %1305 = vmatpush1.msra.mxu0 0.0
        %1306 = vmatprep.subr.mxu0 0.0
        %1307 = vmatpush1.msra.mxu0 0.0
        %1308 = vmatprep.subr.mxu0 0.0
        %1309 = vmatpush1.msra.mxu0 0.0
        %1310 = vmatprep.subr.mxu0 0.0
        %1311 = vmatpush1.msra.mxu0 0.0
        %1312 = vmatprep.subr.mxu0 0.0
        %1313 = vmatpush1.msra.mxu0 0.0
        %1314 = vmatprep.subr.mxu0 0.0
        %1315 = vmatpush1.msra.mxu0 %v1279
        %1316 = vmatprep.subr.mxu0 0.0
        %1317 = vmatpush1.msra.mxu0 %v1278
        %1318 = vmatprep.subr.mxu0 0.0
        %1319 = vmatpush1.msra.mxu0 %v1277
        %1320 = vmatprep.subr.mxu0 0.0
        %1321 = vmatpush1.msra.mxu0 %v1276
        %1322 = vmatprep.subr.mxu0 0.0
        %1323 = vmatpush2.msra.mxu0 0.0
        %1324 = vmatprep.subr.mxu0 0.0
        %1325 = vmatpush2.msra.mxu0 0.0
        %1326 = vmatprep.subr.mxu0 0.0
        %1327 = vmatpush2.msra.mxu0 0.0
        %1328 = vmatprep.subr.mxu0 0.0
        %1329 = vmatpush2.msra.mxu0 0.0
        %1330 = vmatprep.subr.mxu0 0.0
        %1331 = vmatpush2.msra.mxu0 0.0
        %1332 = vmatprep.subr.mxu0 0.0
        %1333 = vmatpush2.msra.mxu0 0.0
        %1334 = vmatprep.subr.mxu0 0.0
        %1335 = vmatpush2.msra.mxu0 0.0
        %1336 = vmatprep.subr.mxu0 0.0
        %1337 = vmatpush2.msra.mxu0 0.0
        %1338 = vmatprep.subr.mxu0 0.0
        %1339 = vmatpush2.msra.mxu0 0.0
        %1340 = vmatprep.subr.mxu0 0.0
        %1341 = vmatpush2.msra.mxu0 0.0
        %1342 = vmatprep.subr.mxu0 0.0
        %1343 = vmatpush2.msra.mxu0 0.0
        %1344 = vmatprep.subr.mxu0 0.0
        %1345 = vmatpush2.msra.mxu0 0.0
        %1346 = vmatprep.subr.mxu0 0.0
        %1347 = vmatpush2.msra.mxu0 0.0
        %1348 = vmatprep.subr.mxu0 0.0
        %1349 = vmatpush2.msra.mxu0 0.0
        %1350 = vmatprep.subr.mxu0 0.0
        %1351 = vmatpush2.msra.mxu0 0.0
        %1352 = vmatprep.subr.mxu0 0.0
        %1353 = vmatpush2.msra.mxu0 0.0
        %1354 = vmatprep.mubr.f32.mxu0 0.0
        %1355 = vmatmul.mubr.f32.gmra.mxu0 %v1288
        %v1356 = vpop.f32.mrf.mxu0
        %v1357 = vadd.f32 %v1284, %v1356
        %v1358 = vpop.f32.mrf.mxu0
        %1359 = vdwg.mxu0
        %v1360 = vadd.f32 %v614, %v1357
        %v1361 = vsel %vm1286, %v1360, 0.0
        %1362 = vadd.xlane.f32.xlu0 %v1361
        %v1363 = vpop.xlane.xlu0 %1362
        %v1364 = vrcp.pop 32.0
        %v1365 = vmul.f32 %v1363, %v1364
        %v1366 = vsub.f32 %v1360, %v1365
        %v1367 = vmul.f32 %v1366, %v1366
        %v1368 = vsel %vm1286, %v1367, 0.0
        %1369 = vadd.xlane.f32.xlu0 %v1368
        %v1370 = vpop.xlane.xlu0 %1369
        %v1371 = vmul.f32 %v1370, %v1364
        %v1372 = vadd.f32 %v1371, 1e-05
        %v1373 = vrsqrt.pop %v1372
        %v1374 = vmul.f32 %v1366, %v1373
        %v1376 = vlaneseq
        %v1377 = vshrl.u32 %v1376, 7
        %v1378 = vsub.s32 0, %v1377
        %v1379 = vrot.slane %v452, %v1378
        %v1381 = vmul.f32 %v1374, %v1379
        %v1383 = vlaneseq
        %v1384 = vshrl.u32 %v1383, 7
        %v1385 = vsub.s32 0, %v1384
        %v1386 = vrot.slane %v453, %v1385
        %v1388 = vadd.f32 %v1381, %v1386
        %v1389 = vld [vmem:[%s9] sm:$0xff]
        %v1390 = vld [vmem:[%s9 + $0x8] sm:$0xff]
        %v1391 = vld [vmem:[%s9 + $0x10] sm:$0xff]
        %v1392 = vld [vmem:[%s9 + $0x18] sm:$0xff]
        %v1394 = vlaneseq
        %v1395 = vshrl.u32 %v1394, 7
        %v1396 = vsub.s32 0, %v1395
        %v1397 = vrot.slane %v455, %v1396
        %v1400 = vsel %vm1286, %v1388, 0
        %1402 = vmatprep.subr.mxu0 0.0
        %1403 = vmatpush1.msra.mxu0 0.0
        %1404 = vmatprep.subr.mxu0 0.0
        %1405 = vmatpush1.msra.mxu0 0.0
        %1406 = vmatprep.subr.mxu0 0.0
        %1407 = vmatpush1.msra.mxu0 0.0
        %1408 = vmatprep.subr.mxu0 0.0
        %1409 = vmatpush1.msra.mxu0 0.0
        %1410 = vmatprep.subr.mxu0 0.0
        %1411 = vmatpush1.msra.mxu0 0.0
        %1412 = vmatprep.subr.mxu0 0.0
        %1413 = vmatpush1.msra.mxu0 0.0
        %1414 = vmatprep.subr.mxu0 0.0
        %1415 = vmatpush1.msra.mxu0 0.0
        %1416 = vmatprep.subr.mxu0 0.0
        %1417 = vmatpush1.msra.mxu0 0.0
        %1418 = vmatprep.subr.mxu0 0.0
        %1419 = vmatpush1.msra.mxu0 0.0
        %1420 = vmatprep.subr.mxu0 0.0
        %1421 = vmatpush1.msra.mxu0 0.0
        %1422 = vmatprep.subr.mxu0 0.0
        %1423 = vmatpush1.msra.mxu0 0.0
        %1424 = vmatprep.subr.mxu0 0.0
        %1425 = vmatpush1.msra.mxu0 0.0
        %1426 = vmatprep.subr.mxu0 0.0
        %1427 = vmatpush1.msra.mxu0 %v1392
        %1428 = vmatprep.subr.mxu0 0.0
        %1429 = vmatpush1.msra.mxu0 %v1391
        %1430 = vmatprep.subr.mxu0 0.0
        %1431 = vmatpush1.msra.mxu0 %v1390
        %1432 = vmatprep.subr.mxu0 0.0
        %1433 = vmatpush1.msra.mxu0 %v1389
        %1434 = vmatprep.subr.mxu0 0.0
        %1435 = vmatpush2.msra.mxu0 0.0
        %1436 = vmatprep.subr.mxu0 0.0
        %1437 = vmatpush2.msra.mxu0 0.0
        %1438 = vmatprep.subr.mxu0 0.0
        %1439 = vmatpush2.msra.mxu0 0.0
        %1440 = vmatprep.subr.mxu0 0.0
        %1441 = vmatpush2.msra.mxu0 0.0
        %1442 = vmatprep.subr.mxu0 0.0
        %1443 = vmatpush2.msra.mxu0 0.0
        %1444 = vmatprep.subr.mxu0 0.0
        %1445 = vmatpush2.msra.mxu0 0.0
        %1446 = vmatprep.subr.mxu0 0.0
        %1447 = vmatpush2.msra.mxu0 0.0
        %1448 = vmatprep.subr.mxu0 0.0
        %1449 = vmatpush2.msra.mxu0 0.0
        %1450 = vmatprep.subr.mxu0 0.0
        %1451 = vmatpush2.msra.mxu0 0.0
        %1452 = vmatprep.subr.mxu0 0.0
        %1453 = vmatpush2.msra.mxu0 0.0
        %1454 = vmatprep.subr.mxu0 0.0
        %1455 = vmatpush2.msra.mxu0 0.0
        %1456 = vmatprep.subr.mxu0 0.0
        %1457 = vmatpush2.msra.mxu0 0.0
        %1458 = vmatprep.subr.mxu0 0.0
        %1459 = vmatpush2.msra.mxu0 0.0
        %1460 = vmatprep.subr.mxu0 0.0
        %1461 = vmatpush2.msra.mxu0 0.0
        %1462 = vmatprep.subr.mxu0 0.0
        %1463 = vmatpush2.msra.mxu0 0.0
        %1464 = vmatprep.subr.mxu0 0.0
        %1465 = vmatpush2.msra.mxu0 0.0
        %1466 = vmatprep.mubr.f32.mxu0 0.0
        %1467 = vmatmul.mubr.f32.gmra.mxu0 %v1400
        %v1468 = vpop.f32.mrf.mxu0
        %v1469 = vadd.f32 %v1397, %v1468
        %v1470 = vpop.f32.mrf.mxu0
        %1471 = vdwg.mxu0
        %v1472 = vmul.f32 %v1469, 0.5
        %v1473 = vmul.f32 %v1469, 0.70710677
        %v1474 = verf.f32.pop %v1473
        %v1475 = vadd.f32 %v1474, 1.0
        %v1476 = vmul.f32 %v1472, %v1475
        %v1477 = vld [vmem:[%s11] sm:$0xff]
        %v1478 = vld [vmem:[%s11 + $0x8] sm:$0xff]
        %v1479 = vld [vmem:[%s11 + $0x10] sm:$0xff]
        %v1480 = vld [vmem:[%s11 + $0x18] sm:$0xff]
        %v1481 = vld [vmem:[%s11 + $0x20] sm:$0xff]
        %v1482 = vld [vmem:[%s11 + $0x28] sm:$0xff]
        %v1483 = vld [vmem:[%s11 + $0x30] sm:$0xff]
        %v1484 = vld [vmem:[%s11 + $0x38] sm:$0xff]
        %v1485 = vld [vmem:[%s11 + $0x40] sm:$0xff]
        %v1486 = vld [vmem:[%s11 + $0x48] sm:$0xff]
        %v1487 = vld [vmem:[%s11 + $0x50] sm:$0xff]
        %v1488 = vld [vmem:[%s11 + $0x58] sm:$0xff]
        %v1489 = vld [vmem:[%s11 + $0x60] sm:$0xff]
        %v1490 = vld [vmem:[%s11 + $0x68] sm:$0xff]
        %v1491 = vld [vmem:[%s11 + $0x70] sm:$0xff]
        %v1492 = vld [vmem:[%s11 + $0x78] sm:$0xff]
        %v1494 = vlaneseq
        %v1495 = vshrl.u32 %v1494, 7
        %v1496 = vsub.s32 0, %v1495
        %v1497 = vrot.slane %v456, %v1496
        %1499 = vmatprep.subr.mxu0 0.0
        %1500 = vmatpush1.msra.mxu0 %v1492
        %1501 = vmatprep.subr.mxu0 0.0
        %1502 = vmatpush1.msra.mxu0 %v1491
        %1503 = vmatprep.subr.mxu0 0.0
        %1504 = vmatpush1.msra.mxu0 %v1490
        %1505 = vmatprep.subr.mxu0 0.0
        %1506 = vmatpush1.msra.mxu0 %v1489
        %1507 = vmatprep.subr.mxu0 0.0
        %1508 = vmatpush1.msra.mxu0 %v1488
        %1509 = vmatprep.subr.mxu0 0.0
        %1510 = vmatpush1.msra.mxu0 %v1487
        %1511 = vmatprep.subr.mxu0 0.0
        %1512 = vmatpush1.msra.mxu0 %v1486
        %1513 = vmatprep.subr.mxu0 0.0
        %1514 = vmatpush1.msra.mxu0 %v1485
        %1515 = vmatprep.subr.mxu0 0.0
        %1516 = vmatpush1.msra.mxu0 %v1484
        %1517 = vmatprep.subr.mxu0 0.0
        %1518 = vmatpush1.msra.mxu0 %v1483
        %1519 = vmatprep.subr.mxu0 0.0
        %1520 = vmatpush1.msra.mxu0 %v1482
        %1521 = vmatprep.subr.mxu0 0.0
        %1522 = vmatpush1.msra.mxu0 %v1481
        %1523 = vmatprep.subr.mxu0 0.0
        %1524 = vmatpush1.msra.mxu0 %v1480
        %1525 = vmatprep.subr.mxu0 0.0
        %1526 = vmatpush1.msra.mxu0 %v1479
        %1527 = vmatprep.subr.mxu0 0.0
        %1528 = vmatpush1.msra.mxu0 %v1478
        %1529 = vmatprep.subr.mxu0 0.0
        %1530 = vmatpush1.msra.mxu0 %v1477
        %1531 = vmatprep.subr.mxu0 0.0
        %1532 = vmatpush2.msra.mxu0 0.0
        %1533 = vmatprep.subr.mxu0 0.0
        %1534 = vmatpush2.msra.mxu0 0.0
        %1535 = vmatprep.subr.mxu0 0.0
        %1536 = vmatpush2.msra.mxu0 0.0
        %1537 = vmatprep.subr.mxu0 0.0
        %1538 = vmatpush2.msra.mxu0 0.0
        %1539 = vmatprep.subr.mxu0 0.0
        %1540 = vmatpush2.msra.mxu0 0.0
        %1541 = vmatprep.subr.mxu0 0.0
        %1542 = vmatpush2.msra.mxu0 0.0
        %1543 = vmatprep.subr.mxu0 0.0
        %1544 = vmatpush2.msra.mxu0 0.0
        %1545 = vmatprep.subr.mxu0 0.0
        %1546 = vmatpush2.msra.mxu0 0.0
        %1547 = vmatprep.subr.mxu0 0.0
        %1548 = vmatpush2.msra.mxu0 0.0
        %1549 = vmatprep.subr.mxu0 0.0
        %1550 = vmatpush2.msra.mxu0 0.0
        %1551 = vmatprep.subr.mxu0 0.0
        %1552 = vmatpush2.msra.mxu0 0.0
        %1553 = vmatprep.subr.mxu0 0.0
        %1554 = vmatpush2.msra.mxu0 0.0
        %1555 = vmatprep.subr.mxu0 0.0
        %1556 = vmatpush2.msra.mxu0 0.0
        %1557 = vmatprep.subr.mxu0 0.0
        %1558 = vmatpush2.msra.mxu0 0.0
        %1559 = vmatprep.subr.mxu0 0.0
        %1560 = vmatpush2.msra.mxu0 0.0
        %1561 = vmatprep.subr.mxu0 0.0
        %1562 = vmatpush2.msra.mxu0 0.0
        %1563 = vmatprep.mubr.f32.mxu0 0.0
        %1564 = vmatmul.mubr.f32.gmra.mxu0 %v1476
        %v1565 = vpop.f32.mrf.mxu0
        %v1566 = vadd.f32 %v1497, %v1565
        %v1567 = vpop.f32.mrf.mxu0
        %1568 = vdwg.mxu0
        %v1569 = vadd.f32 %v1360, %v1566
        %1570 = vst.msk [vmem:[%s445] sm:$0xff] %vm1286, %v1569
        %s1571 = sand.u32 %s327, 1
        %s1572 = scalar_lea.sflag [#allocation6], %s1571
        %s1573 = sand.u32 %s327, 1
        %s1574 = smul.addr %s1573, 8
        %s1575 = scalar_lea.vmem [#allocation5], %s1574
        // Predicated region
        $region77: #{tpu_custom_call.1} parent=71 // pred_check
          %p1576 = pneg %p337
        $region78: #{tpu_custom_call.1} parent=71 // pred_check_branch
          %1578 = sbr.rel (%p1576) target = $region80
        $region79: #{tpu_custom_call.1} parent=71 // pred_region
          %s1580 = ssub.s32 128, 128
          %1581 = vsyncadd %s1572, %s1580
          %s1582 = sadd.s32 %s32, %s31
          %s1583 = smul.addr %s1582, 128
          %s1584 = scalar_lea.hbm %s13, %s1583
          %s1586 = sshll.u32 %s1575, 4
          %s1587 = int_to_ptr.vmem [resolvable:$true] %s1586
          %1589 = dma.vmem_to_hbm [thread:$0]  %s1587, 128, %s1584, %s1572
        $region80: #{tpu_custom_call.1} parent=71 // pred_fallthru
          _
      $region72: #{tpu_custom_call.1} parent=5 // pred_fallthru
        _
      %p1590 = scmp.le.s32.totalorder 2, %s22
      // Predicated region
      $region81: #{tpu_custom_call.1} parent=5 // pred_check
        %p1591 = pneg %p1590
      $region82: #{tpu_custom_call.1} parent=5 // pred_check_branch
        %1593 = sbr.rel (%p1591) target = $region84
      $region83: #{tpu_custom_call.1} parent=5 // pred_region
        %s1594 = ssub.s32 %s22, 2
        // Predicated region
        $region85: #{tpu_custom_call.1} parent=83 // pred_check
          %p1595 = pneg %p343
        $region86: #{tpu_custom_call.1} parent=83 // pred_check_branch
          %1597 = sbr.rel (%p1595) target = $region88
        $region87: #{tpu_custom_call.1} parent=83 // pred_region
          %s1598 = sand.u32 %s328, 1
          %s1599 = scalar_lea.sflag [#allocation6], %s1598
          %s1600 = sand.u32 %s328, 1
          %s1601 = smul.addr %s1600, 8
          %s1602 = scalar_lea.vmem [#allocation5], %s1601
          %1603 = dma.done %s1599, 128
        $region88: #{tpu_custom_call.1} parent=83 // pred_fallthru
          _
      $region84: #{tpu_custom_call.1} parent=5 // pred_fallthru
        _
    $region6: #{tpu_custom_call.1} parent=1 // loop_footer
      %s26 = sadd.s32 1, %s22
    $region7: #{tpu_custom_call.1} parent=1 // loop_footer_branch
      %21 = sbr.rel target = $region3
    $region8: #{tpu_custom_call.1} parent=1 // loop_exit
      _
    %1604 = vsyncpa [#allocation6], 1
    %s1605 = scalar_lea.sflag [#allocation6], 1
    %1606 = vsyncpa %s1605, 1

</llo_original>
